<compile_context>
chip_gen: v7x
topology: tpu7x:2x2x1
jax: 0.10.0
libtpu: 0.0.40
codegen_flags: <defaults>
</compile_context>

<pallas_src>
import math
import functools

import jax
import jax.numpy as jnp
from jax import lax
from jax.experimental import pallas as pl
from jax.experimental.pallas import tpu as pltpu

SEQ = 64          # sequence length (matches module's example inputs)
HIDDEN = 768      # model hidden size (fixed by Linear(768, ...))
HEAD = 8          # attention_head_size


def attn_kernel(xqkv_ref, mask_ref, wqkv_ref, bqkv_ref, wo_ref, bo_ref, out_ref):
    bqkv = bqkv_ref[...]                              # (1, 24) f32

    # Single fused projection: (3S, 768) bf16 @ (768, 24) bf16 -> f32.
    # NOTE: the 1/sqrt(HEAD) softmax scale is already folded into the q columns.
    proj = jnp.dot(xqkv_ref[...], wqkv_ref[...],
                   preferred_element_type=jnp.float32)          # (3S, 24)

    # Diagonal (S, HEAD) blocks: rows [q; k; v], cols [wq | wk | wv].
    q = proj[0 * SEQ:1 * SEQ, 0 * HEAD:1 * HEAD] + bqkv[:, 0 * HEAD:1 * HEAD]
    k = proj[1 * SEQ:2 * SEQ, 1 * HEAD:2 * HEAD] + bqkv[:, 1 * HEAD:2 * HEAD]
    v = proj[2 * SEQ:3 * SEQ, 2 * HEAD:3 * HEAD] + bqkv[:, 2 * HEAD:3 * HEAD]

    # attention scores: contract the head dim of both operands directly
    # (no explicit (S,8)->(8,S) transpose); bf16 operands, f32 accumulate.
    qk = lax.dot_general(q.astype(jnp.bfloat16), k.astype(jnp.bfloat16),
                         dimension_numbers=(((1,), (1,)), ((), ())),
                         preferred_element_type=jnp.float32)    # (S, S)
    qk = qk + mask_ref[...].astype(jnp.float32)

    # numerically stable softmax (f32); normalize with the EUP reciprocal.
    m = jnp.max(qk, axis=-1, keepdims=True)
    e = jnp.exp(qk - m)
    denom = jnp.sum(e, axis=-1, keepdims=True)
    attn = e * pl.reciprocal(denom, approx=True)

    # epilogue re-associated as attn @ (v @ wo): both matmuls are lane-dense
    # (N=768), and both run the bf16 MXU path with f32 accumulation.
    vwo = jnp.dot(v.astype(jnp.bfloat16), wo_ref[...],
                  preferred_element_type=jnp.float32)           # (S, 768)
    out_ref[...] = (jnp.dot(attn.astype(jnp.bfloat16), vwo.astype(jnp.bfloat16),
                            preferred_element_type=jnp.float32)
                    + bo_ref[...])


def prepare_params(params):
    """One-time weight prep (call once at parameter load, NOT per forward):
    fold the softmax scale into the q projection, concat qkv weights/biases,
    and cast MXU operands to bf16."""
    scale = 1.0 / math.sqrt(HEAD)
    wqkv = jnp.concatenate(
        [params["wq"] * scale, params["wk"], params["wv"]], axis=1)   # (768, 24)
    bqkv = jnp.concatenate(
        [params["bq"] * scale, params["bk"], params["bv"]], axis=1)   # (1, 24)
    return (wqkv.astype(jnp.bfloat16),
            bqkv.astype(jnp.float32),
            params["wo"].astype(jnp.bfloat16),
            params["bo"].astype(jnp.float32))


def _prepare_activations(query, key, value, attn_mask):
    """Per-call activation prep (fused under jit): stack q/k/v rows into one
    (3S, 768) bf16 slab; mask as bf16."""
    B, S, D = query.shape
    xqkv = jnp.concatenate(
        [query.reshape(S, D), key.reshape(S, D), value.reshape(S, D)],
        axis=0).astype(jnp.bfloat16)                                  # (3S, 768)
    m2 = attn_mask.reshape(S, S).astype(jnp.bfloat16)
    return xqkv, m2


@functools.partial(jax.jit, static_argnames=())
def attention_forward(query, key, value, attn_mask, kernel_params):
    """query/key/value: (1, S, 768); attn_mask: (1, S, S); returns (1, S, 768) f32.
    kernel_params is the tuple returned by prepare_params()."""
    B, S, D = query.shape
    assert B == 1, "kernel assumes batch size 1 (as in the reference module inputs)"
    # Working set (activations + mask + weights + double buffers) is < 1 MiB:
    # fits VMEM on v5e/v6e/v7x with no tiling.  For B>1 / larger S, add a
    # leading "parallel" grid axis over batch (uses both v7x TensorCores) and
    # tile KV flash-style before the f32 (S,S) mask approaches VMEM capacity.

    xqkv, m2 = _prepare_activations(query, key, value, attn_mask)
    wqkv, bqkv, wo, bo = kernel_params
    args = (xqkv, m2, wqkv, bqkv, wo, bo)

    vmem = pl.BlockSpec(memory_space=pltpu.MemorySpace.VMEM)

    out = pl.pallas_call(
        attn_kernel,
        out_shape=jax.ShapeDtypeStruct((S, D), jnp.float32),
        in_specs=[vmem] * len(args),
        out_specs=vmem,
        cost_estimate=pl.CostEstimate(
            flops=14_300_000,           # fused projection + scores + re-associated epilogue
            transcendentals=4_160,      # exp on (S,S) + per-row reciprocal
            bytes_accessed=560_000,     # bf16 xqkv/mask/weights + f32 biases/output
        ),
    )(*args)
    return out.reshape(B, S, D)


def init_params(key):
    """Deterministic PyTorch-style Linear init: U(-1/sqrt(fan_in), 1/sqrt(fan_in))."""
    ks = jax.random.split(key, 8)

    def lin(kw, kb, fan_in, fan_out):
        bound = 1.0 / math.sqrt(fan_in)
        w = jax.random.uniform(kw, (fan_in, fan_out), jnp.float32, -bound, bound)
        b = jax.random.uniform(kb, (1, fan_out), jnp.float32, -bound, bound)
        return w, b

    wq, bq = lin(ks[0], ks[1], HIDDEN, HEAD)
    wk, bk = lin(ks[2], ks[3], HIDDEN, HEAD)
    wv, bv = lin(ks[4], ks[5], HIDDEN, HEAD)
    wo, bo = lin(ks[6], ks[7], HEAD, HIDDEN)
    return dict(wq=wq, bq=bq, wk=wk, bk=bk, wv=wv, bv=bv, wo=wo, bo=bo)


def reference_forward(query, key, value, attn_mask, p):
    """Pure-JAX f32 reference of the original module semantics."""
    q = query @ p["wq"] + p["bq"]
    k = key @ p["wk"] + p["bk"]
    v = value @ p["wv"] + p["bv"]
    qk = q @ jnp.swapaxes(k, -2, -1) / math.sqrt(HEAD)
    qk = qk + attn_mask
    attn = jax.nn.softmax(qk, axis=-1)
    return (attn @ v) @ p["wo"] + p["bo"]


def matched_reference(xqkv, m2, wqkv, bqkv, wo, bo):
    """Pure-JAX reference mirroring the exact bf16 quantization points of the
    kernel — tight check of the kernel implementation itself."""
    def bq16(x):  # round-trip through bf16
        return x.astype(jnp.bfloat16).astype(jnp.float32)

    proj = xqkv.astype(jnp.float32) @ wqkv.astype(jnp.float32)
    q = proj[0 * SEQ:1 * SEQ, 0 * HEAD:1 * HEAD] + bqkv[:, 0 * HEAD:1 * HEAD]
    k = proj[1 * SEQ:2 * SEQ, 1 * HEAD:2 * HEAD] + bqkv[:, 1 * HEAD:2 * HEAD]
    v = proj[2 * SEQ:3 * SEQ, 2 * HEAD:3 * HEAD] + bqkv[:, 2 * HEAD:3 * HEAD]
    qk = bq16(q) @ bq16(k).T + m2.astype(jnp.float32)
    attn = jax.nn.softmax(qk, axis=-1)
    vwo = bq16(v) @ wo.astype(jnp.float32)
    return bq16(attn) @ bq16(vwo) + bo


if __name__ == "__main__":
    root = jax.random.PRNGKey(0)
    k_q, k_k, k_v, k_p = jax.random.split(root, 4)

    query = jax.random.normal(k_q, (1, SEQ, HIDDEN), jnp.float32)
    key = jax.random.normal(k_k, (1, SEQ, HIDDEN), jnp.float32)
    value = jax.random.normal(k_v, (1, SEQ, HIDDEN), jnp.float32)
    attn_mask = jnp.ones((1, SEQ, SEQ), jnp.float32)

    params = init_params(k_p)
    kernel_params = prepare_params(params)        # one-time weight prep (hoisted)

    out = attention_forward(query, key, value, attn_mask, kernel_params)
    out = jax.block_until_ready(out)
    assert out.shape == (1, SEQ, HIDDEN)

    # Tight check: kernel vs reference built from the same bf16-quantized operands.
    xqkv, m2 = _prepare_activations(query, key, value, attn_mask)
    matched = matched_reference(xqkv, m2, *kernel_params)
    assert jnp.allclose(out.reshape(SEQ, HIDDEN), matched, atol=1e-2, rtol=1e-2), \
        "mismatch vs matched (bf16-quantized) JAX reference"

    # Sanity check: kernel vs full-f32 module reference (looser — bf16 quantization).
    ref = reference_forward(query, key, value, attn_mask, params)
    assert jnp.allclose(out, ref, atol=6e-2, rtol=6e-2), \
        "mismatch vs f32 module reference"

    print("KERNEL_OK")
</pallas_src>

<mosaic_0001>
module attributes {stable_mosaic.version = 11 : i64} {
  func.func @attn_kernel(%arg0: memref<192x768xbf16, #tpu.memory_space<vmem>>, %arg1: memref<64x64xbf16, #tpu.memory_space<vmem>>, %arg2: memref<768x24xbf16, #tpu.memory_space<vmem>>, %arg3: memref<1x24xf32, #tpu.memory_space<vmem>>, %arg4: memref<8x768xbf16, #tpu.memory_space<vmem>>, %arg5: memref<1x768xf32, #tpu.memory_space<vmem>>, %arg6: memref<64x768xf32, #tpu.memory_space<vmem>>) attributes {dimension_semantics = [], scalar_prefetch = 0 : i64, scratch_operands = 0 : i64, tpu.core_type = #tpu.core_type<tc>} {
    %c0 = arith.constant 0 : index
    %c0_0 = arith.constant 0 : index
    %0 = vector.load %arg3[%c0, %c0_0] : memref<1x24xf32, #tpu.memory_space<vmem>>, vector<1x24xf32>
    %c0_1 = arith.constant 0 : index
    %c0_2 = arith.constant 0 : index
    %1 = vector.load %arg0[%c0_1, %c0_2] : memref<192x768xbf16, #tpu.memory_space<vmem>>, vector<192x768xbf16>
    %c0_3 = arith.constant 0 : index
    %c0_4 = arith.constant 0 : index
    %2 = vector.load %arg2[%c0_3, %c0_4] : memref<768x24xbf16, #tpu.memory_space<vmem>>, vector<768x24xbf16>
    %cst = arith.constant dense<0.000000e+00> : vector<192x24xf32>
    %3 = tpu.matmul %1, %2, %cst {dimension_numbers = #tpu.dot_dimension_numbers<[1], [0], [0], [1], [0, 0, 1, 1], [], []>} : vector<192x768xbf16>, vector<768x24xbf16>, vector<192x24xf32> -> vector<192x24xf32>
    %4 = vector.extract_strided_slice %3 {offsets = [0, 0], sizes = [64, 8], strides = [1, 1]} : vector<192x24xf32> to vector<64x8xf32>
    %5 = vector.extract_strided_slice %0 {offsets = [0, 0], sizes = [1, 8], strides = [1, 1]} : vector<1x24xf32> to vector<1x8xf32>
    %6 = vector.broadcast %5 : vector<1x8xf32> to vector<64x8xf32>
    %7 = arith.addf %4, %6 : vector<64x8xf32>
    %8 = vector.extract_strided_slice %3 {offsets = [64, 8], sizes = [64, 8], strides = [1, 1]} : vector<192x24xf32> to vector<64x8xf32>
    %9 = vector.extract_strided_slice %0 {offsets = [0, 8], sizes = [1, 8], strides = [1, 1]} : vector<1x24xf32> to vector<1x8xf32>
    %10 = vector.broadcast %9 : vector<1x8xf32> to vector<64x8xf32>
    %11 = arith.addf %8, %10 : vector<64x8xf32>
    %12 = vector.extract_strided_slice %3 {offsets = [128, 16], sizes = [64, 8], strides = [1, 1]} : vector<192x24xf32> to vector<64x8xf32>
    %13 = vector.extract_strided_slice %0 {offsets = [0, 16], sizes = [1, 8], strides = [1, 1]} : vector<1x24xf32> to vector<1x8xf32>
    %14 = vector.broadcast %13 : vector<1x8xf32> to vector<64x8xf32>
    %15 = arith.addf %12, %14 : vector<64x8xf32>
    %16 = arith.truncf %7 : vector<64x8xf32> to vector<64x8xbf16>
    %17 = arith.truncf %11 : vector<64x8xf32> to vector<64x8xbf16>
    %cst_5 = arith.constant dense<0.000000e+00> : vector<64x64xf32>
    %18 = tpu.matmul %16, %17, %cst_5 {dimension_numbers = #tpu.dot_dimension_numbers<[1], [1], [0], [0], [0, 0, 1, 0], [], []>} : vector<64x8xbf16>, vector<64x8xbf16>, vector<64x64xf32> -> vector<64x64xf32>
    %c0_6 = arith.constant 0 : index
    %c0_7 = arith.constant 0 : index
    %19 = vector.load %arg1[%c0_6, %c0_7] : memref<64x64xbf16, #tpu.memory_space<vmem>>, vector<64x64xbf16>
    %20 = arith.extf %19 : vector<64x64xbf16> to vector<64x64xf32>
    %21 = arith.addf %18, %20 : vector<64x64xf32>
    %cst_8 = arith.constant dense<0xFF800000> : vector<64xf32>
    %22 = vector.multi_reduction <maximumf>, %21, %cst_8 [1] : vector<64x64xf32> to vector<64xf32>
    %23 = vector.shape_cast %22 : vector<64xf32> to vector<64x1xf32>
    %24 = vector.broadcast %23 : vector<64x1xf32> to vector<64x64xf32>
    %25 = arith.subf %21, %24 : vector<64x64xf32>
    %26 = math.exp %25 : vector<64x64xf32>
    %cst_9 = arith.constant dense<0.000000e+00> : vector<64xf32>
    %27 = vector.multi_reduction <add>, %26, %cst_9 [1] : vector<64x64xf32> to vector<64xf32>
    %28 = vector.shape_cast %27 : vector<64xf32> to vector<64x1xf32>
    %29 = tpu.reciprocal %28 {approx = true} : vector<64x1xf32> -> vector<64x1xf32>
    %30 = vector.broadcast %29 : vector<64x1xf32> to vector<64x64xf32>
    %31 = arith.mulf %26, %30 : vector<64x64xf32>
    %32 = arith.truncf %15 : vector<64x8xf32> to vector<64x8xbf16>
    %c0_10 = arith.constant 0 : index
    %c0_11 = arith.constant 0 : index
    %33 = vector.load %arg4[%c0_10, %c0_11] : memref<8x768xbf16, #tpu.memory_space<vmem>>, vector<8x768xbf16>
    %cst_12 = arith.constant dense<0.000000e+00> : vector<64x768xf32>
    %34 = tpu.matmul %32, %33, %cst_12 {dimension_numbers = #tpu.dot_dimension_numbers<[1], [0], [0], [1], [0, 0, 1, 1], [], []>} : vector<64x8xbf16>, vector<8x768xbf16>, vector<64x768xf32> -> vector<64x768xf32>
    %35 = arith.truncf %31 : vector<64x64xf32> to vector<64x64xbf16>
    %36 = arith.truncf %34 : vector<64x768xf32> to vector<64x768xbf16>
    %cst_13 = arith.constant dense<0.000000e+00> : vector<64x768xf32>
    %37 = tpu.matmul %35, %36, %cst_13 {dimension_numbers = #tpu.dot_dimension_numbers<[1], [0], [0], [1], [0, 0, 1, 1], [], []>} : vector<64x64xbf16>, vector<64x768xbf16>, vector<64x768xf32> -> vector<64x768xf32>
    %c0_14 = arith.constant 0 : index
    %c0_15 = arith.constant 0 : index
    %38 = vector.load %arg5[%c0_14, %c0_15] : memref<1x768xf32, #tpu.memory_space<vmem>>, vector<1x768xf32>
    %39 = vector.broadcast %38 : vector<1x768xf32> to vector<64x768xf32>
    %40 = arith.addf %37, %39 : vector<64x768xf32>
    %c0_16 = arith.constant 0 : index
    %c0_17 = arith.constant 0 : index
    %41 = vector.load %arg6[%c0_16, %c0_17] : memref<64x768xf32, #tpu.memory_space<vmem>>, vector<64x768xf32>
    tpu.vector_store %arg6[%c0_16, %c0_17], %40 {strides = array<i32>} : memref<64x768xf32, #tpu.memory_space<vmem>>, vector<64x768xf32>,
    return
  }
}

</mosaic_0001>

<llo_original>
// kernel: attention_forward.1
$region0: #{attention_forward.1}
  #allocation0 [shape = 'u32[]', space=smem, size = 0x4, offset = 0x4, fixed_abs, tag = 'smem constant byte address 0x4 - core index']
  #allocation1 [shape = 'u32[144,128]{1,0:T(1,128)}', space=vmem, size = 0x12000, scoped, tag = 'internal scratch']
  %s0 = inlined_call_operand.vmem [shape: bf16[192,768], index: 0, kind: input, shape index: {}]
  %s1 = inlined_call_operand.vmem [shape: bf16[64,64], index: 1, kind: input, shape index: {}]
  %s2 = inlined_call_operand.vmem [shape: bf16[768,24], index: 2, kind: input, shape index: {}]
  %s3 = inlined_call_operand.vmem [shape: f32[1,24], index: 3, kind: input, shape index: {}]
  %s4 = inlined_call_operand.vmem [shape: bf16[8,768], index: 4, kind: input, shape index: {}]
  %s5 = inlined_call_operand.vmem [shape: f32[1,768], index: 5, kind: input, shape index: {}]
  %s6 = inlined_call_operand.hbm [shape: f32[64,768], index: 6, kind: output, shape index: {}]
  %s7 = sld [smem:[#allocation0]]
  $region34: #{attention_forward.1} parent=0
    _
  %s9 = ssub.s32 1, %s7
  %s10 = scalar_select 0, %s9, %s7
  $region1: #{attention_forward.1} parent=0
    #allocation2 [shape = 'u8[196608]{0}', space=vmem, size = 0x30000, scoped, tag = 'output window, operand 0, single buffered']
    #allocation3 [shape = 's32[1]{0}', space=sflag, size = 0x4, scoped, tag = 'scoped memory for attention_forward.1']
    %11 = vsyncpa [#allocation3], 0
    // Predicated region
    $region2: #{attention_forward.1} parent=1 // pred_check
      _
    $region3: #{attention_forward.1} parent=1 // pred_check_branch
      %13 = sbr.rel (0) target = $region5
    $region4: #{attention_forward.1} parent=1 // pred_region
      _
    $region5: #{attention_forward.1} parent=1 // pred_fallthru
      _
    // Predicated region
    $region6: #{attention_forward.1} parent=1 // pred_check
      _
    $region7: #{attention_forward.1} parent=1 // pred_check_branch
      %15 = sbr.rel (0) target = $region9
    $region8: #{attention_forward.1} parent=1 // pred_region
      _
    $region9: #{attention_forward.1} parent=1 // pred_fallthru
      _
    // Predicated region
    $region10: #{attention_forward.1} parent=1 // pred_check
      _
    $region11: #{attention_forward.1} parent=1 // pred_check_branch
      %17 = sbr.rel (0) target = $region13
    $region12: #{attention_forward.1} parent=1 // pred_region
      _
    $region13: #{attention_forward.1} parent=1 // pred_fallthru
      _
    // Predicated region
    $region14: #{attention_forward.1} parent=1 // pred_check
      _
    $region15: #{attention_forward.1} parent=1 // pred_check_branch
      %19 = sbr.rel (0) target = $region17
    $region16: #{attention_forward.1} parent=1 // pred_region
      _
    $region17: #{attention_forward.1} parent=1 // pred_fallthru
      _
    // Predicated region
    $region18: #{attention_forward.1} parent=1 // pred_check
      _
    $region19: #{attention_forward.1} parent=1 // pred_check_branch
      %21 = sbr.rel (0) target = $region21
    $region20: #{attention_forward.1} parent=1 // pred_region
      _
    $region21: #{attention_forward.1} parent=1 // pred_fallthru
      _
    // Predicated region
    $region22: #{attention_forward.1} parent=1 // pred_check
      _
    $region23: #{attention_forward.1} parent=1 // pred_check_branch
      %23 = sbr.rel (0) target = $region25
    $region24: #{attention_forward.1} parent=1 // pred_region
      _
    $region25: #{attention_forward.1} parent=1 // pred_fallthru
      _
    %v25 = vld [vmem:[%s3] sm:$0x1]
    %v26 = vld [vmem:[%s0] sm:$0xff]
    %v27 = vld [vmem:[%s0 + $0x8] sm:$0xff]
    %v28 = vld [vmem:[%s0 + $0x10] sm:$0xff]
    %v29 = vld [vmem:[%s0 + $0x18] sm:$0xff]
    %v30 = vld [vmem:[%s0 + $0x20] sm:$0xff]
    %v31 = vld [vmem:[%s0 + $0x28] sm:$0xff]
    %v32 = vld [vmem:[%s0 + $0x30] sm:$0xff]
    %v33 = vld [vmem:[%s0 + $0x38] sm:$0xff]
    %v34 = vld [vmem:[%s0 + $0x40] sm:$0xff]
    %v35 = vld [vmem:[%s0 + $0x48] sm:$0xff]
    %v36 = vld [vmem:[%s0 + $0x50] sm:$0xff]
    %v37 = vld [vmem:[%s0 + $0x58] sm:$0xff]
    %v38 = vld [vmem:[%s0 + $0x60] sm:$0xff]
    %v39 = vld [vmem:[%s0 + $0x68] sm:$0xff]
    %v40 = vld [vmem:[%s0 + $0x70] sm:$0xff]
    %v41 = vld [vmem:[%s0 + $0x78] sm:$0xff]
    %v42 = vld [vmem:[%s0 + $0x80] sm:$0xff]
    %v43 = vld [vmem:[%s0 + $0x88] sm:$0xff]
    %v44 = vld [vmem:[%s0 + $0x90] sm:$0xff]
    %v45 = vld [vmem:[%s0 + $0x98] sm:$0xff]
    %v46 = vld [vmem:[%s0 + $0xa0] sm:$0xff]
    %v47 = vld [vmem:[%s0 + $0xa8] sm:$0xff]
    %v48 = vld [vmem:[%s0 + $0xb0] sm:$0xff]
    %v49 = vld [vmem:[%s0 + $0xb8] sm:$0xff]
    %v50 = vld [vmem:[%s0 + $0xc0] sm:$0xff]
    %v51 = vld [vmem:[%s0 + $0xc8] sm:$0xff]
    %v52 = vld [vmem:[%s0 + $0xd0] sm:$0xff]
    %v53 = vld [vmem:[%s0 + $0xd8] sm:$0xff]
    %v54 = vld [vmem:[%s0 + $0xe0] sm:$0xff]
    %v55 = vld [vmem:[%s0 + $0xe8] sm:$0xff]
    %v56 = vld [vmem:[%s0 + $0xf0] sm:$0xff]
    %v57 = vld [vmem:[%s0 + $0xf8] sm:$0xff]
    %v58 = vld [vmem:[%s0 + $0x100] sm:$0xff]
    %v59 = vld [vmem:[%s0 + $0x108] sm:$0xff]
    %v60 = vld [vmem:[%s0 + $0x110] sm:$0xff]
    %v61 = vld [vmem:[%s0 + $0x118] sm:$0xff]
    %v62 = vld [vmem:[%s0 + $0x120] sm:$0xff]
    %v63 = vld [vmem:[%s0 + $0x128] sm:$0xff]
    %v64 = vld [vmem:[%s0 + $0x130] sm:$0xff]
    %v65 = vld [vmem:[%s0 + $0x138] sm:$0xff]
    %v66 = vld [vmem:[%s0 + $0x140] sm:$0xff]
    %v67 = vld [vmem:[%s0 + $0x148] sm:$0xff]
    %v68 = vld [vmem:[%s0 + $0x150] sm:$0xff]
    %v69 = vld [vmem:[%s0 + $0x158] sm:$0xff]
    %v70 = vld [vmem:[%s0 + $0x160] sm:$0xff]
    %v71 = vld [vmem:[%s0 + $0x168] sm:$0xff]
    %v72 = vld [vmem:[%s0 + $0x170] sm:$0xff]
    %v73 = vld [vmem:[%s0 + $0x178] sm:$0xff]
    %v74 = vld [vmem:[%s0 + $0x180] sm:$0xff]
    %v75 = vld [vmem:[%s0 + $0x188] sm:$0xff]
    %v76 = vld [vmem:[%s0 + $0x190] sm:$0xff]
    %v77 = vld [vmem:[%s0 + $0x198] sm:$0xff]
    %v78 = vld [vmem:[%s0 + $0x1a0] sm:$0xff]
    %v79 = vld [vmem:[%s0 + $0x1a8] sm:$0xff]
    %v80 = vld [vmem:[%s0 + $0x1b0] sm:$0xff]
    %v81 = vld [vmem:[%s0 + $0x1b8] sm:$0xff]
    %v82 = vld [vmem:[%s0 + $0x1c0] sm:$0xff]
    %v83 = vld [vmem:[%s0 + $0x1c8] sm:$0xff]
    %v84 = vld [vmem:[%s0 + $0x1d0] sm:$0xff]
    %v85 = vld [vmem:[%s0 + $0x1d8] sm:$0xff]
    %v86 = vld [vmem:[%s0 + $0x1e0] sm:$0xff]
    %v87 = vld [vmem:[%s0 + $0x1e8] sm:$0xff]
    %v88 = vld [vmem:[%s0 + $0x1f0] sm:$0xff]
    %v89 = vld [vmem:[%s0 + $0x1f8] sm:$0xff]
    %v90 = vld [vmem:[%s0 + $0x200] sm:$0xff]
    %v91 = vld [vmem:[%s0 + $0x208] sm:$0xff]
    %v92 = vld [vmem:[%s0 + $0x210] sm:$0xff]
    %v93 = vld [vmem:[%s0 + $0x218] sm:$0xff]
    %v94 = vld [vmem:[%s0 + $0x220] sm:$0xff]
    %v95 = vld [vmem:[%s0 + $0x228] sm:$0xff]
    %v96 = vld [vmem:[%s0 + $0x230] sm:$0xff]
    %v97 = vld [vmem:[%s0 + $0x238] sm:$0xff]
    %v98 = vld [vmem:[%s2] sm:$0xf]
    %v99 = vld [vmem:[%s2 + $0x4] sm:$0xf]
    %v100 = vld [vmem:[%s2 + $0x8] sm:$0xf]
    %v101 = vld [vmem:[%s2 + $0xc] sm:$0xf]
    %v102 = vld [vmem:[%s2 + $0x10] sm:$0xf]
    %v103 = vld [vmem:[%s2 + $0x14] sm:$0xf]
    %v104 = vld [vmem:[%s2 + $0x18] sm:$0xf]
    %v105 = vld [vmem:[%s2 + $0x1c] sm:$0xf]
    %v106 = vld [vmem:[%s2 + $0x20] sm:$0xf]
    %v107 = vld [vmem:[%s2 + $0x24] sm:$0xf]
    %v108 = vld [vmem:[%s2 + $0x28] sm:$0xf]
    %v109 = vld [vmem:[%s2 + $0x2c] sm:$0xf]
    %v110 = vld [vmem:[%s2 + $0x30] sm:$0xf]
    %v111 = vld [vmem:[%s2 + $0x34] sm:$0xf]
    %v112 = vld [vmem:[%s2 + $0x38] sm:$0xf]
    %v113 = vld [vmem:[%s2 + $0x3c] sm:$0xf]
    %v114 = vld [vmem:[%s2 + $0x40] sm:$0xf]
    %v115 = vld [vmem:[%s2 + $0x44] sm:$0xf]
    %v116 = vld [vmem:[%s2 + $0x48] sm:$0xf]
    %v117 = vld [vmem:[%s2 + $0x4c] sm:$0xf]
    %v118 = vld [vmem:[%s2 + $0x50] sm:$0xf]
    %v119 = vld [vmem:[%s2 + $0x54] sm:$0xf]
    %v120 = vld [vmem:[%s2 + $0x58] sm:$0xf]
    %v121 = vld [vmem:[%s2 + $0x5c] sm:$0xf]
    %v122 = vld [vmem:[%s2 + $0x60] sm:$0xf]
    %v123 = vld [vmem:[%s2 + $0x64] sm:$0xf]
    %v124 = vld [vmem:[%s2 + $0x68] sm:$0xf]
    %v125 = vld [vmem:[%s2 + $0x6c] sm:$0xf]
    %v126 = vld [vmem:[%s2 + $0x70] sm:$0xf]
    %v127 = vld [vmem:[%s2 + $0x74] sm:$0xf]
    %v128 = vld [vmem:[%s2 + $0x78] sm:$0xf]
    %v129 = vld [vmem:[%s2 + $0x7c] sm:$0xf]
    %v130 = vld [vmem:[%s2 + $0x80] sm:$0xf]
    %v131 = vld [vmem:[%s2 + $0x84] sm:$0xf]
    %v132 = vld [vmem:[%s2 + $0x88] sm:$0xf]
    %v133 = vld [vmem:[%s2 + $0x8c] sm:$0xf]
    %v134 = vld [vmem:[%s2 + $0x90] sm:$0xf]
    %v135 = vld [vmem:[%s2 + $0x94] sm:$0xf]
    %v136 = vld [vmem:[%s2 + $0x98] sm:$0xf]
    %v137 = vld [vmem:[%s2 + $0x9c] sm:$0xf]
    %v138 = vld [vmem:[%s2 + $0xa0] sm:$0xf]
    %v139 = vld [vmem:[%s2 + $0xa4] sm:$0xf]
    %v140 = vld [vmem:[%s2 + $0xa8] sm:$0xf]
    %v141 = vld [vmem:[%s2 + $0xac] sm:$0xf]
    %v142 = vld [vmem:[%s2 + $0xb0] sm:$0xf]
    %v143 = vld [vmem:[%s2 + $0xb4] sm:$0xf]
    %v144 = vld [vmem:[%s2 + $0xb8] sm:$0xf]
    %v145 = vld [vmem:[%s2 + $0xbc] sm:$0xf]
    %v146 = vld [vmem:[%s2 + $0xc0] sm:$0xf]
    %v147 = vld [vmem:[%s2 + $0xc4] sm:$0xf]
    %v148 = vld [vmem:[%s2 + $0xc8] sm:$0xf]
    %v149 = vld [vmem:[%s2 + $0xcc] sm:$0xf]
    %v150 = vld [vmem:[%s2 + $0xd0] sm:$0xf]
    %v151 = vld [vmem:[%s2 + $0xd4] sm:$0xf]
    %v152 = vld [vmem:[%s2 + $0xd8] sm:$0xf]
    %v153 = vld [vmem:[%s2 + $0xdc] sm:$0xf]
    %v154 = vld [vmem:[%s2 + $0xe0] sm:$0xf]
    %v155 = vld [vmem:[%s2 + $0xe4] sm:$0xf]
    %v156 = vld [vmem:[%s2 + $0xe8] sm:$0xf]
    %v157 = vld [vmem:[%s2 + $0xec] sm:$0xf]
    %v158 = vld [vmem:[%s2 + $0xf0] sm:$0xf]
    %v159 = vld [vmem:[%s2 + $0xf4] sm:$0xf]
    %v160 = vld [vmem:[%s2 + $0xf8] sm:$0xf]
    %v161 = vld [vmem:[%s2 + $0xfc] sm:$0xf]
    %v162 = vld [vmem:[%s2 + $0x100] sm:$0xf]
    %v163 = vld [vmem:[%s2 + $0x104] sm:$0xf]
    %v164 = vld [vmem:[%s2 + $0x108] sm:$0xf]
    %v165 = vld [vmem:[%s2 + $0x10c] sm:$0xf]
    %v166 = vld [vmem:[%s2 + $0x110] sm:$0xf]
    %v167 = vld [vmem:[%s2 + $0x114] sm:$0xf]
    %v168 = vld [vmem:[%s2 + $0x118] sm:$0xf]
    %v169 = vld [vmem:[%s2 + $0x11c] sm:$0xf]
    %v170 = vld [vmem:[%s2 + $0x120] sm:$0xf]
    %v171 = vld [vmem:[%s2 + $0x124] sm:$0xf]
    %v172 = vld [vmem:[%s2 + $0x128] sm:$0xf]
    %v173 = vld [vmem:[%s2 + $0x12c] sm:$0xf]
    %v174 = vld [vmem:[%s2 + $0x130] sm:$0xf]
    %v175 = vld [vmem:[%s2 + $0x134] sm:$0xf]
    %v176 = vld [vmem:[%s2 + $0x138] sm:$0xf]
    %v177 = vld [vmem:[%s2 + $0x13c] sm:$0xf]
    %v178 = vld [vmem:[%s2 + $0x140] sm:$0xf]
    %v179 = vld [vmem:[%s2 + $0x144] sm:$0xf]
    %v180 = vld [vmem:[%s2 + $0x148] sm:$0xf]
    %v181 = vld [vmem:[%s2 + $0x14c] sm:$0xf]
    %v182 = vld [vmem:[%s2 + $0x150] sm:$0xf]
    %v183 = vld [vmem:[%s2 + $0x154] sm:$0xf]
    %v184 = vld [vmem:[%s2 + $0x158] sm:$0xf]
    %v185 = vld [vmem:[%s2 + $0x15c] sm:$0xf]
    %v186 = vld [vmem:[%s2 + $0x160] sm:$0xf]
    %v187 = vld [vmem:[%s2 + $0x164] sm:$0xf]
    %v188 = vld [vmem:[%s2 + $0x168] sm:$0xf]
    %v189 = vld [vmem:[%s2 + $0x16c] sm:$0xf]
    %v190 = vld [vmem:[%s2 + $0x170] sm:$0xf]
    %v191 = vld [vmem:[%s2 + $0x174] sm:$0xf]
    %v192 = vld [vmem:[%s2 + $0x178] sm:$0xf]
    %v193 = vld [vmem:[%s2 + $0x17c] sm:$0xf]
    %v266 = vunpack.c.l.b16 %v26
    %v267 = vunpack.c.h.b16 %v26
    %v268 = vunpack.c.l.b16 %v27
    %v269 = vunpack.c.h.b16 %v27
    %v270 = vunpack.c.l.b16 %v28
    %v271 = vunpack.c.h.b16 %v28
    %v272 = vunpack.c.l.b16 %v29
    %v273 = vunpack.c.h.b16 %v29
    %v274 = vunpack.c.l.b16 %v30
    %v275 = vunpack.c.h.b16 %v30
    %v276 = vunpack.c.l.b16 %v31
    %v277 = vunpack.c.h.b16 %v31
    %v278 = vunpack.c.l.b16 %v32
    %v279 = vunpack.c.h.b16 %v32
    %v280 = vunpack.c.l.b16 %v33
    %v281 = vunpack.c.h.b16 %v33
    %v282 = vunpack.c.l.b16 %v34
    %v283 = vunpack.c.h.b16 %v34
    %v284 = vunpack.c.l.b16 %v35
    %v285 = vunpack.c.h.b16 %v35
    %v286 = vunpack.c.l.b16 %v36
    %v287 = vunpack.c.h.b16 %v36
    %v288 = vunpack.c.l.b16 %v37
    %v289 = vunpack.c.h.b16 %v37
    %v290 = vunpack.c.l.b16 %v38
    %v291 = vunpack.c.h.b16 %v38
    %v292 = vunpack.c.l.b16 %v39
    %v293 = vunpack.c.h.b16 %v39
    %v294 = vunpack.c.l.b16 %v40
    %v295 = vunpack.c.h.b16 %v40
    %v296 = vunpack.c.l.b16 %v41
    %v297 = vunpack.c.h.b16 %v41
    %v298 = vunpack.c.l.b16 %v42
    %v299 = vunpack.c.h.b16 %v42
    %v300 = vunpack.c.l.b16 %v43
    %v301 = vunpack.c.h.b16 %v43
    %v302 = vunpack.c.l.b16 %v44
    %v303 = vunpack.c.h.b16 %v44
    %v304 = vunpack.c.l.b16 %v45
    %v305 = vunpack.c.h.b16 %v45
    %v306 = vunpack.c.l.b16 %v46
    %v307 = vunpack.c.h.b16 %v46
    %v308 = vunpack.c.l.b16 %v47
    %v309 = vunpack.c.h.b16 %v47
    %v310 = vunpack.c.l.b16 %v48
    %v311 = vunpack.c.h.b16 %v48
    %v312 = vunpack.c.l.b16 %v49
    %v313 = vunpack.c.h.b16 %v49
    %v314 = vunpack.c.l.b16 %v50
    %v315 = vunpack.c.h.b16 %v50
    %v316 = vunpack.c.l.b16 %v51
    %v317 = vunpack.c.h.b16 %v51
    %v318 = vunpack.c.l.b16 %v52
    %v319 = vunpack.c.h.b16 %v52
    %v320 = vunpack.c.l.b16 %v53
    %v321 = vunpack.c.h.b16 %v53
    %v322 = vunpack.c.l.b16 %v54
    %v323 = vunpack.c.h.b16 %v54
    %v324 = vunpack.c.l.b16 %v55
    %v325 = vunpack.c.h.b16 %v55
    %v326 = vunpack.c.l.b16 %v56
    %v327 = vunpack.c.h.b16 %v56
    %v328 = vunpack.c.l.b16 %v57
    %v329 = vunpack.c.h.b16 %v57
    %v330 = vunpack.c.l.b16 %v58
    %v331 = vunpack.c.h.b16 %v58
    %v332 = vunpack.c.l.b16 %v59
    %v333 = vunpack.c.h.b16 %v59
    %v334 = vunpack.c.l.b16 %v60
    %v335 = vunpack.c.h.b16 %v60
    %v336 = vunpack.c.l.b16 %v61
    %v337 = vunpack.c.h.b16 %v61
    %v338 = vunpack.c.l.b16 %v62
    %v339 = vunpack.c.h.b16 %v62
    %v340 = vunpack.c.l.b16 %v63
    %v341 = vunpack.c.h.b16 %v63
    %v342 = vunpack.c.l.b16 %v64
    %v343 = vunpack.c.h.b16 %v64
    %v344 = vunpack.c.l.b16 %v65
    %v345 = vunpack.c.h.b16 %v65
    %v346 = vunpack.c.l.b16 %v66
    %v347 = vunpack.c.h.b16 %v66
    %v348 = vunpack.c.l.b16 %v67
    %v349 = vunpack.c.h.b16 %v67
    %v350 = vunpack.c.l.b16 %v68
    %v351 = vunpack.c.h.b16 %v68
    %v352 = vunpack.c.l.b16 %v69
    %v353 = vunpack.c.h.b16 %v69
    %v354 = vunpack.c.l.b16 %v70
    %v355 = vunpack.c.h.b16 %v70
    %v356 = vunpack.c.l.b16 %v71
    %v357 = vunpack.c.h.b16 %v71
    %v358 = vunpack.c.l.b16 %v72
    %v359 = vunpack.c.h.b16 %v72
    %v360 = vunpack.c.l.b16 %v73
    %v361 = vunpack.c.h.b16 %v73
    %v362 = vunpack.c.l.b16 %v74
    %v363 = vunpack.c.h.b16 %v74
    %v364 = vunpack.c.l.b16 %v75
    %v365 = vunpack.c.h.b16 %v75
    %v366 = vunpack.c.l.b16 %v76
    %v367 = vunpack.c.h.b16 %v76
    %v368 = vunpack.c.l.b16 %v77
    %v369 = vunpack.c.h.b16 %v77
    %v370 = vunpack.c.l.b16 %v78
    %v371 = vunpack.c.h.b16 %v78
    %v372 = vunpack.c.l.b16 %v79
    %v373 = vunpack.c.h.b16 %v79
    %v374 = vunpack.c.l.b16 %v80
    %v375 = vunpack.c.h.b16 %v80
    %v376 = vunpack.c.l.b16 %v81
    %v377 = vunpack.c.h.b16 %v81
    %v378 = vunpack.c.l.b16 %v82
    %v379 = vunpack.c.h.b16 %v82
    %v380 = vunpack.c.l.b16 %v83
    %v381 = vunpack.c.h.b16 %v83
    %v382 = vunpack.c.l.b16 %v84
    %v383 = vunpack.c.h.b16 %v84
    %v384 = vunpack.c.l.b16 %v85
    %v385 = vunpack.c.h.b16 %v85
    %v386 = vunpack.c.l.b16 %v86
    %v387 = vunpack.c.h.b16 %v86
    %v388 = vunpack.c.l.b16 %v87
    %v389 = vunpack.c.h.b16 %v87
    %v390 = vunpack.c.l.b16 %v88
    %v391 = vunpack.c.h.b16 %v88
    %v392 = vunpack.c.l.b16 %v89
    %v393 = vunpack.c.h.b16 %v89
    %v394 = vunpack.c.l.b16 %v90
    %v395 = vunpack.c.h.b16 %v90
    %v396 = vunpack.c.l.b16 %v91
    %v397 = vunpack.c.h.b16 %v91
    %v398 = vunpack.c.l.b16 %v92
    %v399 = vunpack.c.h.b16 %v92
    %v400 = vunpack.c.l.b16 %v93
    %v401 = vunpack.c.h.b16 %v93
    %v402 = vunpack.c.l.b16 %v94
    %v403 = vunpack.c.h.b16 %v94
    %v404 = vunpack.c.l.b16 %v95
    %v405 = vunpack.c.h.b16 %v95
    %v406 = vunpack.c.l.b16 %v96
    %v407 = vunpack.c.h.b16 %v96
    %v408 = vunpack.c.l.b16 %v97
    %v409 = vunpack.c.h.b16 %v97
    %v410 = vpack.c.b16 %v272, %v266
    %v411 = vpack.c.b16 %v273, %v267
    %v412 = vpack.c.b16 %v274, %v268
    %v413 = vpack.c.b16 %v275, %v269
    %v414 = vpack.c.b16 %v276, %v270
    %v415 = vpack.c.b16 %v277, %v271
    %v416 = vpack.c.b16 %v284, %v278
    %v417 = vpack.c.b16 %v285, %v279
    %v418 = vpack.c.b16 %v286, %v280
    %v419 = vpack.c.b16 %v287, %v281
    %v420 = vpack.c.b16 %v288, %v282
    %v421 = vpack.c.b16 %v289, %v283
    %v422 = vpack.c.b16 %v296, %v290
    %v423 = vpack.c.b16 %v297, %v291
    %v424 = vpack.c.b16 %v298, %v292
    %v425 = vpack.c.b16 %v299, %v293
    %v426 = vpack.c.b16 %v300, %v294
    %v427 = vpack.c.b16 %v301, %v295
    %v428 = vpack.c.b16 %v308, %v302
    %v429 = vpack.c.b16 %v309, %v303
    %v430 = vpack.c.b16 %v310, %v304
    %v431 = vpack.c.b16 %v311, %v305
    %v432 = vpack.c.b16 %v312, %v306
    %v433 = vpack.c.b16 %v313, %v307
    %v434 = vpack.c.b16 %v320, %v314
    %v435 = vpack.c.b16 %v321, %v315
    %v436 = vpack.c.b16 %v322, %v316
    %v437 = vpack.c.b16 %v323, %v317
    %v438 = vpack.c.b16 %v324, %v318
    %v439 = vpack.c.b16 %v325, %v319
    %v440 = vpack.c.b16 %v332, %v326
    %v441 = vpack.c.b16 %v333, %v327
    %v442 = vpack.c.b16 %v334, %v328
    %v443 = vpack.c.b16 %v335, %v329
    %v444 = vpack.c.b16 %v336, %v330
    %v445 = vpack.c.b16 %v337, %v331
    %v446 = vpack.c.b16 %v344, %v338
    %v447 = vpack.c.b16 %v345, %v339
    %v448 = vpack.c.b16 %v346, %v340
    %v449 = vpack.c.b16 %v347, %v341
    %v450 = vpack.c.b16 %v348, %v342
    %v451 = vpack.c.b16 %v349, %v343
    %v452 = vpack.c.b16 %v356, %v350
    %v453 = vpack.c.b16 %v357, %v351
    %v454 = vpack.c.b16 %v358, %v352
    %v455 = vpack.c.b16 %v359, %v353
    %v456 = vpack.c.b16 %v360, %v354
    %v457 = vpack.c.b16 %v361, %v355
    %v458 = vpack.c.b16 %v368, %v362
    %v459 = vpack.c.b16 %v369, %v363
    %v460 = vpack.c.b16 %v370, %v364
    %v461 = vpack.c.b16 %v371, %v365
    %v462 = vpack.c.b16 %v372, %v366
    %v463 = vpack.c.b16 %v373, %v367
    %v464 = vpack.c.b16 %v380, %v374
    %v465 = vpack.c.b16 %v381, %v375
    %v466 = vpack.c.b16 %v382, %v376
    %v467 = vpack.c.b16 %v383, %v377
    %v468 = vpack.c.b16 %v384, %v378
    %v469 = vpack.c.b16 %v385, %v379
    %v470 = vpack.c.b16 %v392, %v386
    %v471 = vpack.c.b16 %v393, %v387
    %v472 = vpack.c.b16 %v394, %v388
    %v473 = vpack.c.b16 %v395, %v389
    %v474 = vpack.c.b16 %v396, %v390
    %v475 = vpack.c.b16 %v397, %v391
    %v476 = vpack.c.b16 %v404, %v398
    %v477 = vpack.c.b16 %v405, %v399
    %v478 = vpack.c.b16 %v406, %v400
    %v479 = vpack.c.b16 %v407, %v401
    %v480 = vpack.c.b16 %v408, %v402
    %v481 = vpack.c.b16 %v409, %v403
    %v650 = vunpack.c.l.b16 %v98
    %v651 = vunpack.c.l.b16 %v99
    %v652 = vunpack.c.l.b16 %v100
    %v653 = vunpack.c.l.b16 %v101
    %v654 = vunpack.c.l.b16 %v102
    %v655 = vunpack.c.l.b16 %v103
    %v656 = vunpack.c.l.b16 %v104
    %v657 = vunpack.c.l.b16 %v105
    %v658 = vunpack.c.l.b16 %v106
    %v659 = vunpack.c.l.b16 %v107
    %v660 = vunpack.c.l.b16 %v108
    %v661 = vunpack.c.l.b16 %v109
    %v662 = vunpack.c.l.b16 %v110
    %v663 = vunpack.c.l.b16 %v111
    %v664 = vunpack.c.l.b16 %v112
    %v665 = vunpack.c.l.b16 %v113
    %v666 = vunpack.c.l.b16 %v114
    %v667 = vunpack.c.l.b16 %v115
    %v668 = vunpack.c.l.b16 %v116
    %v669 = vunpack.c.l.b16 %v117
    %v670 = vunpack.c.l.b16 %v118
    %v671 = vunpack.c.l.b16 %v119
    %v672 = vunpack.c.l.b16 %v120
    %v673 = vunpack.c.l.b16 %v121
    %v674 = vunpack.c.l.b16 %v122
    %v675 = vunpack.c.l.b16 %v123
    %v676 = vunpack.c.l.b16 %v124
    %v677 = vunpack.c.l.b16 %v125
    %v678 = vunpack.c.l.b16 %v126
    %v679 = vunpack.c.l.b16 %v127
    %v680 = vunpack.c.l.b16 %v128
    %v681 = vunpack.c.l.b16 %v129
    %v682 = vunpack.c.l.b16 %v130
    %v683 = vunpack.c.l.b16 %v131
    %v684 = vunpack.c.l.b16 %v132
    %v685 = vunpack.c.l.b16 %v133
    %v686 = vunpack.c.l.b16 %v134
    %v687 = vunpack.c.l.b16 %v135
    %v688 = vunpack.c.l.b16 %v136
    %v689 = vunpack.c.l.b16 %v137
    %v690 = vunpack.c.l.b16 %v138
    %v691 = vunpack.c.l.b16 %v139
    %v692 = vunpack.c.l.b16 %v140
    %v693 = vunpack.c.l.b16 %v141
    %v694 = vunpack.c.l.b16 %v142
    %v695 = vunpack.c.l.b16 %v143
    %v696 = vunpack.c.l.b16 %v144
    %v697 = vunpack.c.l.b16 %v145
    %v698 = vunpack.c.l.b16 %v146
    %v699 = vunpack.c.l.b16 %v147
    %v700 = vunpack.c.l.b16 %v148
    %v701 = vunpack.c.l.b16 %v149
    %v702 = vunpack.c.l.b16 %v150
    %v703 = vunpack.c.l.b16 %v151
    %v704 = vunpack.c.l.b16 %v152
    %v705 = vunpack.c.l.b16 %v153
    %v706 = vunpack.c.l.b16 %v154
    %v707 = vunpack.c.l.b16 %v155
    %v708 = vunpack.c.l.b16 %v156
    %v709 = vunpack.c.l.b16 %v157
    %v710 = vunpack.c.l.b16 %v158
    %v711 = vunpack.c.l.b16 %v159
    %v712 = vunpack.c.l.b16 %v160
    %v713 = vunpack.c.l.b16 %v161
    %v714 = vunpack.c.l.b16 %v162
    %v715 = vunpack.c.l.b16 %v163
    %v716 = vunpack.c.l.b16 %v164
    %v717 = vunpack.c.l.b16 %v165
    %v718 = vunpack.c.l.b16 %v166
    %v719 = vunpack.c.l.b16 %v167
    %v720 = vunpack.c.l.b16 %v168
    %v721 = vunpack.c.l.b16 %v169
    %v722 = vunpack.c.l.b16 %v170
    %v723 = vunpack.c.l.b16 %v171
    %v724 = vunpack.c.l.b16 %v172
    %v725 = vunpack.c.l.b16 %v173
    %v726 = vunpack.c.l.b16 %v174
    %v727 = vunpack.c.l.b16 %v175
    %v728 = vunpack.c.l.b16 %v176
    %v729 = vunpack.c.l.b16 %v177
    %v730 = vunpack.c.l.b16 %v178
    %v731 = vunpack.c.l.b16 %v179
    %v732 = vunpack.c.l.b16 %v180
    %v733 = vunpack.c.l.b16 %v181
    %v734 = vunpack.c.l.b16 %v182
    %v735 = vunpack.c.l.b16 %v183
    %v736 = vunpack.c.l.b16 %v184
    %v737 = vunpack.c.l.b16 %v185
    %v738 = vunpack.c.l.b16 %v186
    %v739 = vunpack.c.l.b16 %v187
    %v740 = vunpack.c.l.b16 %v188
    %v741 = vunpack.c.l.b16 %v189
    %v742 = vunpack.c.l.b16 %v190
    %v743 = vunpack.c.l.b16 %v191
    %v744 = vunpack.c.l.b16 %v192
    %v745 = vunpack.c.l.b16 %v193
    %v746 = vpack.c.b16 %v651, %v650
    %v747 = vpack.c.b16 %v653, %v652
    %v748 = vpack.c.b16 %v655, %v654
    %v749 = vpack.c.b16 %v657, %v656
    %v750 = vpack.c.b16 %v659, %v658
    %v751 = vpack.c.b16 %v661, %v660
    %v752 = vpack.c.b16 %v663, %v662
    %v753 = vpack.c.b16 %v665, %v664
    %v754 = vpack.c.b16 %v667, %v666
    %v755 = vpack.c.b16 %v669, %v668
    %v756 = vpack.c.b16 %v671, %v670
    %v757 = vpack.c.b16 %v673, %v672
    %v758 = vpack.c.b16 %v675, %v674
    %v759 = vpack.c.b16 %v677, %v676
    %v760 = vpack.c.b16 %v679, %v678
    %v761 = vpack.c.b16 %v681, %v680
    %v762 = vpack.c.b16 %v683, %v682
    %v763 = vpack.c.b16 %v685, %v684
    %v764 = vpack.c.b16 %v687, %v686
    %v765 = vpack.c.b16 %v689, %v688
    %v766 = vpack.c.b16 %v691, %v690
    %v767 = vpack.c.b16 %v693, %v692
    %v768 = vpack.c.b16 %v695, %v694
    %v769 = vpack.c.b16 %v697, %v696
    %v770 = vpack.c.b16 %v699, %v698
    %v771 = vpack.c.b16 %v701, %v700
    %v772 = vpack.c.b16 %v703, %v702
    %v773 = vpack.c.b16 %v705, %v704
    %v774 = vpack.c.b16 %v707, %v706
    %v775 = vpack.c.b16 %v709, %v708
    %v776 = vpack.c.b16 %v711, %v710
    %v777 = vpack.c.b16 %v713, %v712
    %v778 = vpack.c.b16 %v715, %v714
    %v779 = vpack.c.b16 %v717, %v716
    %v780 = vpack.c.b16 %v719, %v718
    %v781 = vpack.c.b16 %v721, %v720
    %v782 = vpack.c.b16 %v723, %v722
    %v783 = vpack.c.b16 %v725, %v724
    %v784 = vpack.c.b16 %v727, %v726
    %v785 = vpack.c.b16 %v729, %v728
    %v786 = vpack.c.b16 %v731, %v730
    %v787 = vpack.c.b16 %v733, %v732
    %v788 = vpack.c.b16 %v735, %v734
    %v789 = vpack.c.b16 %v737, %v736
    %v790 = vpack.c.b16 %v739, %v738
    %v791 = vpack.c.b16 %v741, %v740
    %v792 = vpack.c.b16 %v743, %v742
    %v793 = vpack.c.b16 %v745, %v744
    %842 = vmatprep.subr.bf16.mxu0 0
    %843 = vmatpush1.bf16.msra.mxu0 %v746
    %844 = vmatprep.subr.bf16.mxu0 0
    %845 = vmatpush1.bf16.msra.mxu0 %v747
    %846 = vmatprep.subr.bf16.mxu0 0
    %847 = vmatpush1.bf16.msra.mxu0 %v748
    %848 = vmatprep.subr.bf16.mxu0 0
    %849 = vmatpush1.bf16.msra.mxu0 %v749
    %850 = vmatprep.subr.bf16.mxu0 0
    %851 = vmatpush1.bf16.msra.mxu0 %v750
    %852 = vmatprep.subr.bf16.mxu0 0
    %853 = vmatpush1.bf16.msra.mxu0 %v751
    %854 = vmatprep.subr.bf16.mxu0 0
    %855 = vmatpush1.bf16.msra.mxu0 %v752
    %856 = vmatprep.subr.bf16.mxu0 0
    %857 = vmatpush1.bf16.msra.mxu0 %v753
    %858 = vmatprep.subr.bf16.mxu0 0
    %859 = vmatpush1.bf16.msra.mxu0 %v754
    %860 = vmatprep.subr.bf16.mxu0 0
    %861 = vmatpush1.bf16.msra.mxu0 %v755
    %862 = vmatprep.subr.bf16.mxu0 0
    %863 = vmatpush1.bf16.msra.mxu0 %v756
    %864 = vmatprep.subr.bf16.mxu0 0
    %865 = vmatpush1.bf16.msra.mxu0 %v757
    %866 = vmatprep.subr.bf16.mxu0 0
    %867 = vmatpush1.bf16.msra.mxu0 %v758
    %868 = vmatprep.subr.bf16.mxu0 0
    %869 = vmatpush1.bf16.msra.mxu0 %v759
    %870 = vmatprep.subr.bf16.mxu0 0
    %871 = vmatpush1.bf16.msra.mxu0 %v760
    %872 = vmatprep.subr.bf16.mxu0 0
    %873 = vmatpush1.bf16.msra.mxu0 %v761
    %874 = vmatprep.mubr.bf16.mxu0 %v411
    %875 = vmatmul.mubr.bf16.gmra.mrb[0].mxu0 %v410
    %v876 = vpop.f32.mrb[0].mxu0
    %v877 = vadd.f32 0.0, %v876
    %v878 = vpop.f32.mrb[0].mxu0
    %v879 = vpop.f32.mrb[0].mxu0
    %v880 = vadd.f32 0.0, %v879
    %v881 = vpop.f32.mrb[0].mxu0
    %882 = vmatprep.mubr.bf16.mxu0 %v417
    %883 = vmatmul.mubr.bf16.gmra.mrb[0].mxu0 %v416
    %v884 = vpop.f32.mrb[0].mxu0
    %v885 = vadd.f32 0.0, %v884
    %v886 = vpop.f32.mrb[0].mxu0
    %v887 = vpop.f32.mrb[0].mxu0
    %v888 = vadd.f32 0.0, %v887
    %v889 = vpop.f32.mrb[0].mxu0
    %890 = vmatprep.mubr.bf16.mxu0 %v423
    %891 = vmatmul.mubr.bf16.gmra.mrb[0].mxu0 %v422
    %v892 = vpop.f32.mrb[0].mxu0
    %v893 = vadd.f32 0.0, %v892
    %v894 = vpop.f32.mrb[0].mxu0
    %v895 = vpop.f32.mrb[0].mxu0
    %v896 = vadd.f32 0.0, %v895
    %v897 = vpop.f32.mrb[0].mxu0
    %898 = vmatprep.mubr.bf16.mxu0 %v429
    %899 = vmatmul.mubr.bf16.gmra.mrb[0].mxu0 %v428
    %v900 = vpop.f32.mrb[0].mxu0
    %v901 = vadd.f32 0.0, %v900
    %v902 = vpop.f32.mrb[0].mxu0
    %v903 = vpop.f32.mrb[0].mxu0
    %v904 = vadd.f32 0.0, %v903
    %v905 = vpop.f32.mrb[0].mxu0
    %906 = vmatprep.mubr.bf16.mxu0 %v435
    %907 = vmatmul.mubr.bf16.gmra.mrb[0].mxu0 %v434
    %v908 = vpop.f32.mrb[0].mxu0
    %v909 = vadd.f32 0.0, %v908
    %v910 = vpop.f32.mrb[0].mxu0
    %v911 = vpop.f32.mrb[0].mxu0
    %v912 = vadd.f32 0.0, %v911
    %v913 = vpop.f32.mrb[0].mxu0
    %914 = vmatprep.mubr.bf16.mxu0 %v441
    %915 = vmatmul.mubr.bf16.gmra.mrb[0].mxu0 %v440
    %v916 = vpop.f32.mrb[0].mxu0
    %v917 = vadd.f32 0.0, %v916
    %v918 = vpop.f32.mrb[0].mxu0
    %v919 = vpop.f32.mrb[0].mxu0
    %v920 = vadd.f32 0.0, %v919
    %v921 = vpop.f32.mrb[0].mxu0
    %922 = vmatprep.mubr.bf16.mxu0 %v447
    %923 = vmatmul.mubr.bf16.gmra.mrb[0].mxu0 %v446
    %v924 = vpop.f32.mrb[0].mxu0
    %v925 = vadd.f32 0.0, %v924
    %v926 = vpop.f32.mrb[0].mxu0
    %v927 = vpop.f32.mrb[0].mxu0
    %v928 = vadd.f32 0.0, %v927
    %v929 = vpop.f32.mrb[0].mxu0
    %930 = vmatprep.mubr.bf16.mxu0 %v453
    %931 = vmatmul.mubr.bf16.gmra.mrb[0].mxu0 %v452
    %v932 = vpop.f32.mrb[0].mxu0
    %v933 = vadd.f32 0.0, %v932
    %v934 = vpop.f32.mrb[0].mxu0
    %v935 = vpop.f32.mrb[0].mxu0
    %v936 = vadd.f32 0.0, %v935
    %v937 = vpop.f32.mrb[0].mxu0
    %938 = vmatprep.mubr.bf16.mxu0 %v459
    %939 = vmatmul.mubr.bf16.gmra.mrb[0].mxu0 %v458
    %v940 = vpop.f32.mrb[0].mxu0
    %v941 = vadd.f32 0.0, %v940
    %v942 = vpop.f32.mrb[0].mxu0
    %v943 = vpop.f32.mrb[0].mxu0
    %v944 = vadd.f32 0.0, %v943
    %v945 = vpop.f32.mrb[0].mxu0
    %946 = vmatprep.mubr.bf16.mxu0 %v465
    %947 = vmatmul.mubr.bf16.gmra.mrb[0].mxu0 %v464
    %v948 = vpop.f32.mrb[0].mxu0
    %v949 = vadd.f32 0.0, %v948
    %v950 = vpop.f32.mrb[0].mxu0
    %v951 = vpop.f32.mrb[0].mxu0
    %v952 = vadd.f32 0.0, %v951
    %v953 = vpop.f32.mrb[0].mxu0
    %954 = vmatprep.mubr.bf16.mxu0 %v471
    %955 = vmatmul.mubr.bf16.gmra.mrb[0].mxu0 %v470
    %v956 = vpop.f32.mrb[0].mxu0
    %v957 = vadd.f32 0.0, %v956
    %v958 = vpop.f32.mrb[0].mxu0
    %v959 = vpop.f32.mrb[0].mxu0
    %v960 = vadd.f32 0.0, %v959
    %v961 = vpop.f32.mrb[0].mxu0
    %962 = vmatprep.mubr.bf16.mxu0 %v477
    %963 = vmatmul.mubr.bf16.gmra.mrb[0].mxu0 %v476
    %v964 = vpop.f32.mrb[0].mxu0
    %v965 = vadd.f32 0.0, %v964
    %v966 = vpop.f32.mrb[0].mxu0
    %v967 = vpop.f32.mrb[0].mxu0
    %v968 = vadd.f32 0.0, %v967
    %v969 = vpop.f32.mrb[0].mxu0
    %970 = vdwg.mxu0
    %971 = vmatprep.subr.bf16.mxu0 0
    %972 = vmatpush1.bf16.msra.mxu0 %v762
    %973 = vmatprep.subr.bf16.mxu0 0
    %974 = vmatpush1.bf16.msra.mxu0 %v763
    %975 = vmatprep.subr.bf16.mxu0 0
    %976 = vmatpush1.bf16.msra.mxu0 %v764
    %977 = vmatprep.subr.bf16.mxu0 0
    %978 = vmatpush1.bf16.msra.mxu0 %v765
    %979 = vmatprep.subr.bf16.mxu0 0
    %980 = vmatpush1.bf16.msra.mxu0 %v766
    %981 = vmatprep.subr.bf16.mxu0 0
    %982 = vmatpush1.bf16.msra.mxu0 %v767
    %983 = vmatprep.subr.bf16.mxu0 0
    %984 = vmatpush1.bf16.msra.mxu0 %v768
    %985 = vmatprep.subr.bf16.mxu0 0
    %986 = vmatpush1.bf16.msra.mxu0 %v769
    %987 = vmatprep.subr.bf16.mxu0 0
    %988 = vmatpush1.bf16.msra.mxu0 %v770
    %989 = vmatprep.subr.bf16.mxu0 0
    %990 = vmatpush1.bf16.msra.mxu0 %v771
    %991 = vmatprep.subr.bf16.mxu0 0
    %992 = vmatpush1.bf16.msra.mxu0 %v772
    %993 = vmatprep.subr.bf16.mxu0 0
    %994 = vmatpush1.bf16.msra.mxu0 %v773
    %995 = vmatprep.subr.bf16.mxu0 0
    %996 = vmatpush1.bf16.msra.mxu0 %v774
    %997 = vmatprep.subr.bf16.mxu0 0
    %998 = vmatpush1.bf16.msra.mxu0 %v775
    %999 = vmatprep.subr.bf16.mxu0 0
    %1000 = vmatpush1.bf16.msra.mxu0 %v776
    %1001 = vmatprep.subr.bf16.mxu0 0
    %1002 = vmatpush1.bf16.msra.mxu0 %v777
    %1003 = vmatprep.mubr.bf16.mxu0 %v413
    %1004 = vmatmul.mubr.bf16.gmra.mrb[0].mxu0 %v412
    %v1005 = vpop.f32.mrb[0].mxu0
    %v1006 = vadd.f32 %v877, %v1005
    %v1007 = vpop.f32.mrb[0].mxu0
    %v1008 = vpop.f32.mrb[0].mxu0
    %v1009 = vadd.f32 %v880, %v1008
    %v1010 = vpop.f32.mrb[0].mxu0
    %1011 = vmatprep.mubr.bf16.mxu0 %v419
    %1012 = vmatmul.mubr.bf16.gmra.mrb[0].mxu0 %v418
    %v1013 = vpop.f32.mrb[0].mxu0
    %v1014 = vadd.f32 %v885, %v1013
    %v1015 = vpop.f32.mrb[0].mxu0
    %v1016 = vpop.f32.mrb[0].mxu0
    %v1017 = vadd.f32 %v888, %v1016
    %v1018 = vpop.f32.mrb[0].mxu0
    %1019 = vmatprep.mubr.bf16.mxu0 %v425
    %1020 = vmatmul.mubr.bf16.gmra.mrb[0].mxu0 %v424
    %v1021 = vpop.f32.mrb[0].mxu0
    %v1022 = vadd.f32 %v893, %v1021
    %v1023 = vpop.f32.mrb[0].mxu0
    %v1024 = vpop.f32.mrb[0].mxu0
    %v1025 = vadd.f32 %v896, %v1024
    %v1026 = vpop.f32.mrb[0].mxu0
    %1027 = vmatprep.mubr.bf16.mxu0 %v431
    %1028 = vmatmul.mubr.bf16.gmra.mrb[0].mxu0 %v430
    %v1029 = vpop.f32.mrb[0].mxu0
    %v1030 = vadd.f32 %v901, %v1029
    %v1031 = vpop.f32.mrb[0].mxu0
    %v1032 = vpop.f32.mrb[0].mxu0
    %v1033 = vadd.f32 %v904, %v1032
    %v1034 = vpop.f32.mrb[0].mxu0
    %1035 = vmatprep.mubr.bf16.mxu0 %v437
    %1036 = vmatmul.mubr.bf16.gmra.mrb[0].mxu0 %v436
    %v1037 = vpop.f32.mrb[0].mxu0
    %v1038 = vadd.f32 %v909, %v1037
    %v1039 = vpop.f32.mrb[0].mxu0
    %v1040 = vpop.f32.mrb[0].mxu0
    %v1041 = vadd.f32 %v912, %v1040
    %v1042 = vpop.f32.mrb[0].mxu0
    %1043 = vmatprep.mubr.bf16.mxu0 %v443
    %1044 = vmatmul.mubr.bf16.gmra.mrb[0].mxu0 %v442
    %v1045 = vpop.f32.mrb[0].mxu0
    %v1046 = vadd.f32 %v917, %v1045
    %v1047 = vpop.f32.mrb[0].mxu0
    %v1048 = vpop.f32.mrb[0].mxu0
    %v1049 = vadd.f32 %v920, %v1048
    %v1050 = vpop.f32.mrb[0].mxu0
    %1051 = vmatprep.mubr.bf16.mxu0 %v449
    %1052 = vmatmul.mubr.bf16.gmra.mrb[0].mxu0 %v448
    %v1053 = vpop.f32.mrb[0].mxu0
    %v1054 = vadd.f32 %v925, %v1053
    %v1055 = vpop.f32.mrb[0].mxu0
    %v1056 = vpop.f32.mrb[0].mxu0
    %v1057 = vadd.f32 %v928, %v1056
    %v1058 = vpop.f32.mrb[0].mxu0
    %1059 = vmatprep.mubr.bf16.mxu0 %v455
    %1060 = vmatmul.mubr.bf16.gmra.mrb[0].mxu0 %v454
    %v1061 = vpop.f32.mrb[0].mxu0
    %v1062 = vadd.f32 %v933, %v1061
    %v1063 = vpop.f32.mrb[0].mxu0
    %v1064 = vpop.f32.mrb[0].mxu0
    %v1065 = vadd.f32 %v936, %v1064
    %v1066 = vpop.f32.mrb[0].mxu0
    %1067 = vmatprep.mubr.bf16.mxu0 %v461
    %1068 = vmatmul.mubr.bf16.gmra.mrb[0].mxu0 %v460
    %v1069 = vpop.f32.mrb[0].mxu0
    %v1070 = vadd.f32 %v941, %v1069
    %v1071 = vpop.f32.mrb[0].mxu0
    %v1072 = vpop.f32.mrb[0].mxu0
    %v1073 = vadd.f32 %v944, %v1072
    %v1074 = vpop.f32.mrb[0].mxu0
    %1075 = vmatprep.mubr.bf16.mxu0 %v467
    %1076 = vmatmul.mubr.bf16.gmra.mrb[0].mxu0 %v466
    %v1077 = vpop.f32.mrb[0].mxu0
    %v1078 = vadd.f32 %v949, %v1077
    %v1079 = vpop.f32.mrb[0].mxu0
    %v1080 = vpop.f32.mrb[0].mxu0
    %v1081 = vadd.f32 %v952, %v1080
    %v1082 = vpop.f32.mrb[0].mxu0
    %1083 = vmatprep.mubr.bf16.mxu0 %v473
    %1084 = vmatmul.mubr.bf16.gmra.mrb[0].mxu0 %v472
    %v1085 = vpop.f32.mrb[0].mxu0
    %v1086 = vadd.f32 %v957, %v1085
    %v1087 = vpop.f32.mrb[0].mxu0
    %v1088 = vpop.f32.mrb[0].mxu0
    %v1089 = vadd.f32 %v960, %v1088
    %v1090 = vpop.f32.mrb[0].mxu0
    %1091 = vmatprep.mubr.bf16.mxu0 %v479
    %1092 = vmatmul.mubr.bf16.gmra.mrb[0].mxu0 %v478
    %v1093 = vpop.f32.mrb[0].mxu0
    %v1094 = vadd.f32 %v965, %v1093
    %v1095 = vpop.f32.mrb[0].mxu0
    %v1096 = vpop.f32.mrb[0].mxu0
    %v1097 = vadd.f32 %v968, %v1096
    %v1098 = vpop.f32.mrb[0].mxu0
    %1099 = vdwg.mxu0
    %1100 = vmatprep.subr.bf16.mxu0 0
    %1101 = vmatpush1.bf16.msra.mxu0 %v778
    %1102 = vmatprep.subr.bf16.mxu0 0
    %1103 = vmatpush1.bf16.msra.mxu0 %v779
    %1104 = vmatprep.subr.bf16.mxu0 0
    %1105 = vmatpush1.bf16.msra.mxu0 %v780
    %1106 = vmatprep.subr.bf16.mxu0 0
    %1107 = vmatpush1.bf16.msra.mxu0 %v781
    %1108 = vmatprep.subr.bf16.mxu0 0
    %1109 = vmatpush1.bf16.msra.mxu0 %v782
    %1110 = vmatprep.subr.bf16.mxu0 0
    %1111 = vmatpush1.bf16.msra.mxu0 %v783
    %1112 = vmatprep.subr.bf16.mxu0 0
    %1113 = vmatpush1.bf16.msra.mxu0 %v784
    %1114 = vmatprep.subr.bf16.mxu0 0
    %1115 = vmatpush1.bf16.msra.mxu0 %v785
    %1116 = vmatprep.subr.bf16.mxu0 0
    %1117 = vmatpush1.bf16.msra.mxu0 %v786
    %1118 = vmatprep.subr.bf16.mxu0 0
    %1119 = vmatpush1.bf16.msra.mxu0 %v787
    %1120 = vmatprep.subr.bf16.mxu0 0
    %1121 = vmatpush1.bf16.msra.mxu0 %v788
    %1122 = vmatprep.subr.bf16.mxu0 0
    %1123 = vmatpush1.bf16.msra.mxu0 %v789
    %1124 = vmatprep.subr.bf16.mxu0 0
    %1125 = vmatpush1.bf16.msra.mxu0 %v790
    %1126 = vmatprep.subr.bf16.mxu0 0
    %1127 = vmatpush1.bf16.msra.mxu0 %v791
    %1128 = vmatprep.subr.bf16.mxu0 0
    %1129 = vmatpush1.bf16.msra.mxu0 %v792
    %1130 = vmatprep.subr.bf16.mxu0 0
    %1131 = vmatpush1.bf16.msra.mxu0 %v793
    %1132 = vmatprep.mubr.bf16.mxu0 %v415
    %1133 = vmatmul.mubr.bf16.gmra.mrb[0].mxu0 %v414
    %v1134 = vpop.f32.mrb[0].mxu0
    %v1135 = vadd.f32 %v1006, %v1134
    %v1136 = vpop.f32.mrb[0].mxu0
    %v1137 = vpop.f32.mrb[0].mxu0
    %v1138 = vadd.f32 %v1009, %v1137
    %v1139 = vpop.f32.mrb[0].mxu0
    %1140 = vmatprep.mubr.bf16.mxu0 %v421
    %1141 = vmatmul.mubr.bf16.gmra.mrb[0].mxu0 %v420
    %v1142 = vpop.f32.mrb[0].mxu0
    %v1143 = vadd.f32 %v1014, %v1142
    %v1144 = vpop.f32.mrb[0].mxu0
    %v1145 = vpop.f32.mrb[0].mxu0
    %v1146 = vadd.f32 %v1017, %v1145
    %v1147 = vpop.f32.mrb[0].mxu0
    %1148 = vmatprep.mubr.bf16.mxu0 %v427
    %1149 = vmatmul.mubr.bf16.gmra.mrb[0].mxu0 %v426
    %v1150 = vpop.f32.mrb[0].mxu0
    %v1151 = vadd.f32 %v1022, %v1150
    %v1152 = vpop.f32.mrb[0].mxu0
    %v1153 = vpop.f32.mrb[0].mxu0
    %v1154 = vadd.f32 %v1025, %v1153
    %v1155 = vpop.f32.mrb[0].mxu0
    %1156 = vmatprep.mubr.bf16.mxu0 %v433
    %1157 = vmatmul.mubr.bf16.gmra.mrb[0].mxu0 %v432
    %v1158 = vpop.f32.mrb[0].mxu0
    %v1159 = vadd.f32 %v1030, %v1158
    %v1160 = vpop.f32.mrb[0].mxu0
    %v1161 = vpop.f32.mrb[0].mxu0
    %v1162 = vadd.f32 %v1033, %v1161
    %v1163 = vpop.f32.mrb[0].mxu0
    %1164 = vmatprep.mubr.bf16.mxu0 %v439
    %1165 = vmatmul.mubr.bf16.gmra.mrb[0].mxu0 %v438
    %v1166 = vpop.f32.mrb[0].mxu0
    %v1167 = vadd.f32 %v1038, %v1166
    %v1168 = vpop.f32.mrb[0].mxu0
    %v1169 = vpop.f32.mrb[0].mxu0
    %v1170 = vadd.f32 %v1041, %v1169
    %v1171 = vpop.f32.mrb[0].mxu0
    %1172 = vmatprep.mubr.bf16.mxu0 %v445
    %1173 = vmatmul.mubr.bf16.gmra.mrb[0].mxu0 %v444
    %v1174 = vpop.f32.mrb[0].mxu0
    %v1175 = vadd.f32 %v1046, %v1174
    %v1176 = vpop.f32.mrb[0].mxu0
    %v1177 = vpop.f32.mrb[0].mxu0
    %v1178 = vadd.f32 %v1049, %v1177
    %v1179 = vpop.f32.mrb[0].mxu0
    %1180 = vmatprep.mubr.bf16.mxu0 %v451
    %1181 = vmatmul.mubr.bf16.gmra.mrb[0].mxu0 %v450
    %v1182 = vpop.f32.mrb[0].mxu0
    %v1183 = vadd.f32 %v1054, %v1182
    %v1184 = vpop.f32.mrb[0].mxu0
    %v1185 = vpop.f32.mrb[0].mxu0
    %v1186 = vadd.f32 %v1057, %v1185
    %v1187 = vpop.f32.mrb[0].mxu0
    %1188 = vmatprep.mubr.bf16.mxu0 %v457
    %1189 = vmatmul.mubr.bf16.gmra.mrb[0].mxu0 %v456
    %v1190 = vpop.f32.mrb[0].mxu0
    %v1191 = vadd.f32 %v1062, %v1190
    %v1192 = vpop.f32.mrb[0].mxu0
    %v1193 = vpop.f32.mrb[0].mxu0
    %v1194 = vadd.f32 %v1065, %v1193
    %v1195 = vpop.f32.mrb[0].mxu0
    %1196 = vmatprep.mubr.bf16.mxu0 %v463
    %1197 = vmatmul.mubr.bf16.gmra.mrb[0].mxu0 %v462
    %v1198 = vpop.f32.mrb[0].mxu0
    %v1199 = vadd.f32 %v1070, %v1198
    %v1200 = vpop.f32.mrb[0].mxu0
    %v1201 = vpop.f32.mrb[0].mxu0
    %v1202 = vadd.f32 %v1073, %v1201
    %v1203 = vpop.f32.mrb[0].mxu0
    %1204 = vmatprep.mubr.bf16.mxu0 %v469
    %1205 = vmatmul.mubr.bf16.gmra.mrb[0].mxu0 %v468
    %v1206 = vpop.f32.mrb[0].mxu0
    %v1207 = vadd.f32 %v1078, %v1206
    %v1208 = vpop.f32.mrb[0].mxu0
    %v1209 = vpop.f32.mrb[0].mxu0
    %v1210 = vadd.f32 %v1081, %v1209
    %v1211 = vpop.f32.mrb[0].mxu0
    %1212 = vmatprep.mubr.bf16.mxu0 %v475
    %1213 = vmatmul.mubr.bf16.gmra.mrb[0].mxu0 %v474
    %v1214 = vpop.f32.mrb[0].mxu0
    %v1215 = vadd.f32 %v1086, %v1214
    %v1216 = vpop.f32.mrb[0].mxu0
    %v1217 = vpop.f32.mrb[0].mxu0
    %v1218 = vadd.f32 %v1089, %v1217
    %v1219 = vpop.f32.mrb[0].mxu0
    %1220 = vmatprep.mubr.bf16.mxu0 %v481
    %1221 = vmatmul.mubr.bf16.gmra.mrb[0].mxu0 %v480
    %v1222 = vpop.f32.mrb[0].mxu0
    %v1223 = vadd.f32 %v1094, %v1222
    %v1224 = vpop.f32.mrb[0].mxu0
    %v1225 = vpop.f32.mrb[0].mxu0
    %v1226 = vadd.f32 %v1097, %v1225
    %v1227 = vpop.f32.mrb[0].mxu0
    %1228 = vdwg.mxu0
    %v1230 = vlaneseq
    %v1231 = vshrl.u32 %v1230, 7
    %v1232 = vsub.s32 0, %v1231
    %v1233 = vrot.slane %v25, %v1232
    %v1235 = vadd.f32 %v1135, %v1233
    %v1236 = vadd.f32 %v1138, %v1233
    %v1237 = vadd.f32 %v1143, %v1233
    %v1238 = vadd.f32 %v1146, %v1233
    %v1239 = vadd.f32 %v1151, %v1233
    %v1240 = vadd.f32 %v1154, %v1233
    %v1241 = vadd.f32 %v1159, %v1233
    %v1242 = vadd.f32 %v1162, %v1233
    %v1243 = vadd.f32 %v1167, %v1233
    %v1244 = vadd.f32 %v1170, %v1233
    %v1245 = vadd.f32 %v1175, %v1233
    %v1246 = vadd.f32 %v1178, %v1233
    %v1247 = vadd.f32 %v1183, %v1233
    %v1248 = vadd.f32 %v1186, %v1233
    %v1249 = vadd.f32 %v1191, %v1233
    %v1250 = vadd.f32 %v1194, %v1233
    %v1251 = vadd.f32 %v1199, %v1233
    %v1252 = vadd.f32 %v1202, %v1233
    %v1253 = vadd.f32 %v1207, %v1233
    %v1254 = vadd.f32 %v1210, %v1233
    %v1255 = vadd.f32 %v1215, %v1233
    %v1256 = vadd.f32 %v1218, %v1233
    %v1257 = vadd.f32 %v1223, %v1233
    %v1258 = vadd.f32 %v1226, %v1233
    %v1259 = vpack.c.bf16 %v1236, %v1235
    %v1260 = vpack.c.bf16 %v1238, %v1237
    %v1261 = vpack.c.bf16 %v1240, %v1239
    %v1262 = vpack.c.bf16 %v1242, %v1241
    %v1263 = vpack.c.bf16 %v1244, %v1243
    %v1264 = vpack.c.bf16 %v1246, %v1245
    %v1265 = vpack.c.bf16 %v1248, %v1247
    %v1266 = vpack.c.bf16 %v1250, %v1249
    %v1267 = vld [vmem:[%s1] sm:$0xf]
    %v1268 = vld [vmem:[%s1 + $0x4] sm:$0xf]
    %v1269 = vld [vmem:[%s1 + $0x8] sm:$0xf]
    %v1270 = vld [vmem:[%s1 + $0xc] sm:$0xf]
    %v1271 = vld [vmem:[%s1 + $0x10] sm:$0xf]
    %v1272 = vld [vmem:[%s1 + $0x14] sm:$0xf]
    %v1273 = vld [vmem:[%s1 + $0x18] sm:$0xf]
    %v1274 = vld [vmem:[%s1 + $0x1c] sm:$0xf]
    %v1275 = vunpack.c.l.bf16 %v1267
    %v1276 = vunpack.c.l.bf16 %v1268
    %v1277 = vunpack.c.l.bf16 %v1269
    %v1278 = vunpack.c.l.bf16 %v1270
    %v1279 = vunpack.c.l.bf16 %v1271
    %v1280 = vunpack.c.l.bf16 %v1272
    %v1281 = vunpack.c.l.bf16 %v1273
    %v1282 = vunpack.c.l.bf16 %v1274
    %1287 = vrot.lane.b32.xlu0 %v1263, 120
    %v1288 = vpop.permute.xlu0 %1287
    %1289 = vrot.lane.b32.xlu0 %v1264, 120
    %v1290 = vpop.permute.xlu0 %1289
    %1291 = vrot.lane.b32.xlu0 %v1265, 120
    %v1292 = vpop.permute.xlu0 %1291
    %1293 = vrot.lane.b32.xlu0 %v1266, 120
    %v1294 = vpop.permute.xlu0 %1293
    %vm1295 = vcmask 64512
    %v1297 = vsel %vm1295, %v1259, 0
    %v1300 = vsel %vm1295, %v1260, 0
    %v1303 = vsel %vm1295, %v1261, 0
    %v1306 = vsel %vm1295, %v1262, 0
    %v1309 = vsel %vm1295, %v1288, 0
    %v1312 = vsel %vm1295, %v1290, 0
    %v1315 = vsel %vm1295, %v1292, 0
    %v1318 = vsel %vm1295, %v1294, 0
    %1320 = vmatprep.subr.bf16.mxu0 0
    %1321 = vmatpush1.bf16.xpose.msra.mxu0 %v1309
    %1322 = vmatprep.subr.bf16.mxu0 0
    %1323 = vmatpush1.bf16.xpose.msra.mxu0 %v1312
    %1324 = vmatprep.subr.bf16.mxu0 0
    %1325 = vmatpush1.bf16.xpose.msra.mxu0 %v1315
    %1326 = vmatprep.subr.bf16.mxu0 0
    %1327 = vmatpush1.bf16.xpose.msra.mxu0 %v1318
    %1328 = vmatprep.subr.bf16.mxu0 0
    %1329 = vmatpush1.bf16.xpose.msra.mxu0 0
    %1330 = vmatprep.subr.bf16.mxu0 0
    %1331 = vmatpush1.bf16.xpose.msra.mxu0 0
    %1332 = vmatprep.subr.bf16.mxu0 0
    %1333 = vmatpush1.bf16.xpose.msra.mxu0 0
    %1334 = vmatprep.subr.bf16.mxu0 0
    %1335 = vmatpush1.bf16.xpose.msra.mxu0 0
    %1336 = vmatprep.subr.bf16.mxu0 0
    %1337 = vmatpush1.bf16.xpose.msra.mxu0 0
    %1338 = vmatprep.subr.bf16.mxu0 0
    %1339 = vmatpush1.bf16.xpose.msra.mxu0 0
    %1340 = vmatprep.subr.bf16.mxu0 0
    %1341 = vmatpush1.bf16.xpose.msra.mxu0 0
    %1342 = vmatprep.subr.bf16.mxu0 0
    %1343 = vmatpush1.bf16.xpose.msra.mxu0 0
    %1344 = vmatprep.subr.bf16.mxu0 0
    %1345 = vmatpush1.bf16.xpose.msra.mxu0 0
    %1346 = vmatprep.subr.bf16.mxu0 0
    %1347 = vmatpush1.bf16.xpose.msra.mxu0 0
    %1348 = vmatprep.subr.bf16.mxu0 0
    %1349 = vmatpush1.bf16.xpose.msra.mxu0 0
    %1350 = vmatprep.subr.bf16.mxu0 0
    %1351 = vmatpush1.bf16.xpose.msra.mxu0 0
    %1352 = vmatprep.mubr.bf16.mxu0 0
    %1353 = vmatmul.mubr.bf16.gmra.mrb[0].mxu0 %v1297
    %v1354 = vpop.f32.mrb[0].mxu0
    %v1355 = vadd.f32 %v1275, %v1354
    %v1356 = vpop.f32.mrb[0].mxu0
    %v1357 = vpop.f32.mrb[0].mxu0
    %v1358 = vadd.f32 %v1276, %v1357
    %v1359 = vpop.f32.mrb[0].mxu0
    %1360 = vmatprep.mubr.bf16.mxu0 0
    %1361 = vmatmul.mubr.bf16.gmra.mrb[0].mxu0 %v1300
    %v1362 = vpop.f32.mrb[0].mxu0
    %v1363 = vadd.f32 %v1277, %v1362
    %v1364 = vpop.f32.mrb[0].mxu0
    %v1365 = vpop.f32.mrb[0].mxu0
    %v1366 = vadd.f32 %v1278, %v1365
    %v1367 = vpop.f32.mrb[0].mxu0
    %1368 = vmatprep.mubr.bf16.mxu0 0
    %1369 = vmatmul.mubr.bf16.gmra.mrb[0].mxu0 %v1303
    %v1370 = vpop.f32.mrb[0].mxu0
    %v1371 = vadd.f32 %v1279, %v1370
    %v1372 = vpop.f32.mrb[0].mxu0
    %v1373 = vpop.f32.mrb[0].mxu0
    %v1374 = vadd.f32 %v1280, %v1373
    %v1375 = vpop.f32.mrb[0].mxu0
    %1376 = vmatprep.mubr.bf16.mxu0 0
    %1377 = vmatmul.mubr.bf16.gmra.mrb[0].mxu0 %v1306
    %v1378 = vpop.f32.mrb[0].mxu0
    %v1379 = vadd.f32 %v1281, %v1378
    %v1380 = vpop.f32.mrb[0].mxu0
    %v1381 = vpop.f32.mrb[0].mxu0
    %v1382 = vadd.f32 %v1282, %v1381
    %v1383 = vpop.f32.mrb[0].mxu0
    %1384 = vdwg.mxu0
    %vm1385 = vcmask 523264
    %v1386 = vsel %vm1385, %v1355, -inf
    %1387 = vmax.xlane.f32.xlu0 %v1386
    %v1388 = vpop.xlane.xlu0 %1387
    %v1389 = vsel %vm1385, %v1358, -inf
    %1390 = vmax.xlane.f32.xlu0 %v1389
    %v1391 = vpop.xlane.xlu0 %1390
    %v1392 = vsel %vm1385, %v1363, -inf
    %1393 = vmax.xlane.f32.xlu0 %v1392
    %v1394 = vpop.xlane.xlu0 %1393
    %v1395 = vsel %vm1385, %v1366, -inf
    %1396 = vmax.xlane.f32.xlu0 %v1395
    %v1397 = vpop.xlane.xlu0 %1396
    %v1398 = vsel %vm1385, %v1371, -inf
    %1399 = vmax.xlane.f32.xlu0 %v1398
    %v1400 = vpop.xlane.xlu0 %1399
    %v1401 = vsel %vm1385, %v1374, -inf
    %1402 = vmax.xlane.f32.xlu0 %v1401
    %v1403 = vpop.xlane.xlu0 %1402
    %v1404 = vsel %vm1385, %v1379, -inf
    %1405 = vmax.xlane.f32.xlu0 %v1404
    %v1406 = vpop.xlane.xlu0 %1405
    %v1407 = vsel %vm1385, %v1382, -inf
    %1408 = vmax.xlane.f32.xlu0 %v1407
    %v1409 = vpop.xlane.xlu0 %1408
    %v1410 = vsub.f32 %v1355, %v1388
    %v1411 = vsub.f32 %v1358, %v1391
    %v1412 = vsub.f32 %v1363, %v1394
    %v1413 = vsub.f32 %v1366, %v1397
    %v1414 = vsub.f32 %v1371, %v1400
    %v1415 = vsub.f32 %v1374, %v1403
    %v1416 = vsub.f32 %v1379, %v1406
    %v1417 = vsub.f32 %v1382, %v1409
    %v1418 = vmul.f32 %v1410, 1.442695
    %v1419 = vpow.pop %v1418
    %v1420 = vmul.f32 %v1411, 1.442695
    %v1421 = vpow.pop %v1420
    %v1422 = vmul.f32 %v1412, 1.442695
    %v1423 = vpow.pop %v1422
    %v1424 = vmul.f32 %v1413, 1.442695
    %v1425 = vpow.pop %v1424
    %v1426 = vmul.f32 %v1414, 1.442695
    %v1427 = vpow.pop %v1426
    %v1428 = vmul.f32 %v1415, 1.442695
    %v1429 = vpow.pop %v1428
    %v1430 = vmul.f32 %v1416, 1.442695
    %v1431 = vpow.pop %v1430
    %v1432 = vmul.f32 %v1417, 1.442695
    %v1433 = vpow.pop %v1432
    %v1434 = vsel %vm1385, %v1419, 0.0
    %1435 = vadd.xlane.f32.xlu0 %v1434
    %v1436 = vpop.xlane.xlu0 %1435
    %v1437 = vsel %vm1385, %v1421, 0.0
    %1438 = vadd.xlane.f32.xlu0 %v1437
    %v1439 = vpop.xlane.xlu0 %1438
    %v1440 = vsel %vm1385, %v1423, 0.0
    %1441 = vadd.xlane.f32.xlu0 %v1440
    %v1442 = vpop.xlane.xlu0 %1441
    %v1443 = vsel %vm1385, %v1425, 0.0
    %1444 = vadd.xlane.f32.xlu0 %v1443
    %v1445 = vpop.xlane.xlu0 %1444
    %v1446 = vsel %vm1385, %v1427, 0.0
    %1447 = vadd.xlane.f32.xlu0 %v1446
    %v1448 = vpop.xlane.xlu0 %1447
    %v1449 = vsel %vm1385, %v1429, 0.0
    %1450 = vadd.xlane.f32.xlu0 %v1449
    %v1451 = vpop.xlane.xlu0 %1450
    %v1452 = vsel %vm1385, %v1431, 0.0
    %1453 = vadd.xlane.f32.xlu0 %v1452
    %v1454 = vpop.xlane.xlu0 %1453
    %v1455 = vsel %vm1385, %v1433, 0.0
    %1456 = vadd.xlane.f32.xlu0 %v1455
    %v1457 = vpop.xlane.xlu0 %1456
    %v1458 = vrcp.pop %v1436
    %v1459 = vrcp.pop %v1439
    %v1460 = vrcp.pop %v1442
    %v1461 = vrcp.pop %v1445
    %v1462 = vrcp.pop %v1448
    %v1463 = vrcp.pop %v1451
    %v1464 = vrcp.pop %v1454
    %v1465 = vrcp.pop %v1457
    %v1466 = vmul.f32 %v1419, %v1458
    %v1467 = vmul.f32 %v1421, %v1459
    %v1468 = vmul.f32 %v1423, %v1460
    %v1469 = vmul.f32 %v1425, %v1461
    %v1470 = vmul.f32 %v1427, %v1462
    %v1471 = vmul.f32 %v1429, %v1463
    %v1472 = vmul.f32 %v1431, %v1464
    %v1473 = vmul.f32 %v1433, %v1465
    %v1474 = vpack.c.bf16 %v1252, %v1251
    %v1475 = vpack.c.bf16 %v1254, %v1253
    %v1476 = vpack.c.bf16 %v1256, %v1255
    %v1477 = vpack.c.bf16 %v1258, %v1257
    %v1478 = vld [vmem:[%s4] sm:$0xff]
    %v1479 = vld [vmem:[%s4 + $0x8] sm:$0xff]
    %v1480 = vld [vmem:[%s4 + $0x10] sm:$0xff]
    %1485 = vrot.lane.b32.xlu0 %v1474, 112
    %v1486 = vpop.permute.xlu0 %1485
    %1487 = vrot.lane.b32.xlu0 %v1475, 112
    %v1488 = vpop.permute.xlu0 %1487
    %1489 = vrot.lane.b32.xlu0 %v1476, 112
    %v1490 = vpop.permute.xlu0 %1489
    %1491 = vrot.lane.b32.xlu0 %v1477, 112
    %v1492 = vpop.permute.xlu0 %1491
    %v1496 = vunpack.c.l.b16 %v1478
    %v1497 = vunpack.c.h.b16 %v1478
    %v1498 = vunpack.c.l.b16 %v1479
    %v1499 = vunpack.c.h.b16 %v1479
    %v1500 = vunpack.c.l.b16 %v1480
    %v1501 = vunpack.c.h.b16 %v1480
    %v1502 = vpack.c.b16 %v1496, %v1496
    %v1503 = vpack.c.b16 %v1497, %v1497
    %v1504 = vpack.c.b16 %v1498, %v1498
    %v1505 = vpack.c.b16 %v1499, %v1499
    %v1506 = vpack.c.b16 %v1500, %v1500
    %v1507 = vpack.c.b16 %v1501, %v1501
    %v1509 = vsel %vm1295, %v1486, 0
    %v1512 = vsel %vm1295, %v1488, 0
    %v1515 = vsel %vm1295, %v1490, 0
    %v1518 = vsel %vm1295, %v1492, 0
    %vm1520 = vcmask 1043456
    %v1522 = vsel %vm1520, %v1502, 0
    %v1525 = vsel %vm1520, %v1503, 0
    %v1528 = vsel %vm1520, %v1504, 0
    %v1531 = vsel %vm1520, %v1505, 0
    %v1534 = vsel %vm1520, %v1506, 0
    %v1537 = vsel %vm1520, %v1507, 0
    %1539 = vmatprep.subr.bf16.mxu0 %v1525
    %1540 = vmatpush1.bf16.msra.mxu0 %v1522
    %1541 = vmatprep.subr.bf16.mxu0 0
    %1542 = vmatpush1.bf16.msra.mxu0 0
    %1543 = vmatprep.subr.bf16.mxu0 0
    %1544 = vmatpush1.bf16.msra.mxu0 0
    %1545 = vmatprep.subr.bf16.mxu0 0
    %1546 = vmatpush1.bf16.msra.mxu0 0
    %1547 = vmatprep.subr.bf16.mxu0 0
    %1548 = vmatpush1.bf16.msra.mxu0 0
    %1549 = vmatprep.subr.bf16.mxu0 0
    %1550 = vmatpush1.bf16.msra.mxu0 0
    %1551 = vmatprep.subr.bf16.mxu0 0
    %1552 = vmatpush1.bf16.msra.mxu0 0
    %1553 = vmatprep.subr.bf16.mxu0 0
    %1554 = vmatpush1.bf16.msra.mxu0 0
    %1555 = vmatprep.subr.bf16.mxu0 0
    %1556 = vmatpush1.bf16.msra.mxu0 0
    %1557 = vmatprep.subr.bf16.mxu0 0
    %1558 = vmatpush1.bf16.msra.mxu0 0
    %1559 = vmatprep.subr.bf16.mxu0 0
    %1560 = vmatpush1.bf16.msra.mxu0 0
    %1561 = vmatprep.subr.bf16.mxu0 0
    %1562 = vmatpush1.bf16.msra.mxu0 0
    %1563 = vmatprep.subr.bf16.mxu0 0
    %1564 = vmatpush1.bf16.msra.mxu0 0
    %1565 = vmatprep.subr.bf16.mxu0 0
    %1566 = vmatpush1.bf16.msra.mxu0 0
    %1567 = vmatprep.subr.bf16.mxu0 0
    %1568 = vmatpush1.bf16.msra.mxu0 0
    %1569 = vmatprep.subr.bf16.mxu0 0
    %1570 = vmatpush1.bf16.msra.mxu0 0
    %1571 = vmatprep.mubr.bf16.mxu0 0
    %1572 = vmatmul.mubr.bf16.gmra.mrb[0].mxu0 %v1509
    %v1573 = vpop.f32.mrb[0].mxu0
    %v1574 = vadd.f32 0.0, %v1573
    %v1575 = vpop.f32.mrb[0].mxu0
    %v1576 = vadd.f32 0.0, %v1575
    %v1577 = vpop.f32.mrb[0].mxu0
    %v1578 = vadd.f32 0.0, %v1577
    %v1579 = vpop.f32.mrb[0].mxu0
    %v1580 = vadd.f32 0.0, %v1579
    %1581 = vmatprep.mubr.bf16.mxu0 0
    %1582 = vmatmul.mubr.bf16.gmra.mrb[0].mxu0 %v1512
    %v1583 = vpop.f32.mrb[0].mxu0
    %v1584 = vadd.f32 0.0, %v1583
    %v1585 = vpop.f32.mrb[0].mxu0
    %v1586 = vadd.f32 0.0, %v1585
    %v1587 = vpop.f32.mrb[0].mxu0
    %v1588 = vadd.f32 0.0, %v1587
    %v1589 = vpop.f32.mrb[0].mxu0
    %v1590 = vadd.f32 0.0, %v1589
    %1591 = vmatprep.mubr.bf16.mxu0 0
    %1592 = vmatmul.mubr.bf16.gmra.mrb[0].mxu0 %v1515
    %v1593 = vpop.f32.mrb[0].mxu0
    %v1594 = vadd.f32 0.0, %v1593
    %v1595 = vpop.f32.mrb[0].mxu0
    %v1596 = vadd.f32 0.0, %v1595
    %v1597 = vpop.f32.mrb[0].mxu0
    %v1598 = vadd.f32 0.0, %v1597
    %v1599 = vpop.f32.mrb[0].mxu0
    %v1600 = vadd.f32 0.0, %v1599
    %1601 = vmatprep.mubr.bf16.mxu0 0
    %1602 = vmatmul.mubr.bf16.gmra.mrb[0].mxu0 %v1518
    %v1603 = vpop.f32.mrb[0].mxu0
    %v1604 = vadd.f32 0.0, %v1603
    %v1605 = vpop.f32.mrb[0].mxu0
    %v1606 = vadd.f32 0.0, %v1605
    %v1607 = vpop.f32.mrb[0].mxu0
    %v1608 = vadd.f32 0.0, %v1607
    %v1609 = vpop.f32.mrb[0].mxu0
    %v1610 = vadd.f32 0.0, %v1609
    %1611 = vdwg.mxu0
    %1612 = vmatprep.subr.bf16.mxu0 %v1531
    %1613 = vmatpush1.bf16.msra.mxu0 %v1528
    %1614 = vmatprep.subr.bf16.mxu0 0
    %1615 = vmatpush1.bf16.msra.mxu0 0
    %1616 = vmatprep.subr.bf16.mxu0 0
    %1617 = vmatpush1.bf16.msra.mxu0 0
    %1618 = vmatprep.subr.bf16.mxu0 0
    %1619 = vmatpush1.bf16.msra.mxu0 0
    %1620 = vmatprep.subr.bf16.mxu0 0
    %1621 = vmatpush1.bf16.msra.mxu0 0
    %1622 = vmatprep.subr.bf16.mxu0 0
    %1623 = vmatpush1.bf16.msra.mxu0 0
    %1624 = vmatprep.subr.bf16.mxu0 0
    %1625 = vmatpush1.bf16.msra.mxu0 0
    %1626 = vmatprep.subr.bf16.mxu0 0
    %1627 = vmatpush1.bf16.msra.mxu0 0
    %1628 = vmatprep.subr.bf16.mxu0 0
    %1629 = vmatpush1.bf16.msra.mxu0 0
    %1630 = vmatprep.subr.bf16.mxu0 0
    %1631 = vmatpush1.bf16.msra.mxu0 0
    %1632 = vmatprep.subr.bf16.mxu0 0
    %1633 = vmatpush1.bf16.msra.mxu0 0
    %1634 = vmatprep.subr.bf16.mxu0 0
    %1635 = vmatpush1.bf16.msra.mxu0 0
    %1636 = vmatprep.subr.bf16.mxu0 0
    %1637 = vmatpush1.bf16.msra.mxu0 0
    %1638 = vmatprep.subr.bf16.mxu0 0
    %1639 = vmatpush1.bf16.msra.mxu0 0
    %1640 = vmatprep.subr.bf16.mxu0 0
    %1641 = vmatpush1.bf16.msra.mxu0 0
    %1642 = vmatprep.subr.bf16.mxu0 0
    %1643 = vmatpush1.bf16.msra.mxu0 0
    %1644 = vmatprep.mubr.bf16.mxu0 0
    %1645 = vmatmul.mubr.bf16.gmra.mrb[0].mxu0 %v1509
    %v1646 = vpop.f32.mrb[0].mxu0
    %v1647 = vadd.f32 0.0, %v1646
    %v1648 = vpop.f32.mrb[0].mxu0
    %v1649 = vadd.f32 0.0, %v1648
    %v1650 = vpop.f32.mrb[0].mxu0
    %v1651 = vadd.f32 0.0, %v1650
    %v1652 = vpop.f32.mrb[0].mxu0
    %v1653 = vadd.f32 0.0, %v1652
    %1654 = vmatprep.mubr.bf16.mxu0 0
    %1655 = vmatmul.mubr.bf16.gmra.mrb[0].mxu0 %v1512
    %v1656 = vpop.f32.mrb[0].mxu0
    %v1657 = vadd.f32 0.0, %v1656
    %v1658 = vpop.f32.mrb[0].mxu0
    %v1659 = vadd.f32 0.0, %v1658
    %v1660 = vpop.f32.mrb[0].mxu0
    %v1661 = vadd.f32 0.0, %v1660
    %v1662 = vpop.f32.mrb[0].mxu0
    %v1663 = vadd.f32 0.0, %v1662
    %1664 = vmatprep.mubr.bf16.mxu0 0
    %1665 = vmatmul.mubr.bf16.gmra.mrb[0].mxu0 %v1515
    %v1666 = vpop.f32.mrb[0].mxu0
    %v1667 = vadd.f32 0.0, %v1666
    %v1668 = vpop.f32.mrb[0].mxu0
    %v1669 = vadd.f32 0.0, %v1668
    %v1670 = vpop.f32.mrb[0].mxu0
    %v1671 = vadd.f32 0.0, %v1670
    %v1672 = vpop.f32.mrb[0].mxu0
    %v1673 = vadd.f32 0.0, %v1672
    %1674 = vmatprep.mubr.bf16.mxu0 0
    %1675 = vmatmul.mubr.bf16.gmra.mrb[0].mxu0 %v1518
    %v1676 = vpop.f32.mrb[0].mxu0
    %v1677 = vadd.f32 0.0, %v1676
    %v1678 = vpop.f32.mrb[0].mxu0
    %v1679 = vadd.f32 0.0, %v1678
    %v1680 = vpop.f32.mrb[0].mxu0
    %v1681 = vadd.f32 0.0, %v1680
    %v1682 = vpop.f32.mrb[0].mxu0
    %v1683 = vadd.f32 0.0, %v1682
    %1684 = vdwg.mxu0
    %1685 = vmatprep.subr.bf16.mxu0 %v1537
    %1686 = vmatpush1.bf16.msra.mxu0 %v1534
    %1687 = vmatprep.subr.bf16.mxu0 0
    %1688 = vmatpush1.bf16.msra.mxu0 0
    %1689 = vmatprep.subr.bf16.mxu0 0
    %1690 = vmatpush1.bf16.msra.mxu0 0
    %1691 = vmatprep.subr.bf16.mxu0 0
    %1692 = vmatpush1.bf16.msra.mxu0 0
    %1693 = vmatprep.subr.bf16.mxu0 0
    %1694 = vmatpush1.bf16.msra.mxu0 0
    %1695 = vmatprep.subr.bf16.mxu0 0
    %1696 = vmatpush1.bf16.msra.mxu0 0
    %1697 = vmatprep.subr.bf16.mxu0 0
    %1698 = vmatpush1.bf16.msra.mxu0 0
    %1699 = vmatprep.subr.bf16.mxu0 0
    %1700 = vmatpush1.bf16.msra.mxu0 0
    %1701 = vmatprep.subr.bf16.mxu0 0
    %1702 = vmatpush1.bf16.msra.mxu0 0
    %1703 = vmatprep.subr.bf16.mxu0 0
    %1704 = vmatpush1.bf16.msra.mxu0 0
    %1705 = vmatprep.subr.bf16.mxu0 0
    %1706 = vmatpush1.bf16.msra.mxu0 0
    %1707 = vmatprep.subr.bf16.mxu0 0
    %1708 = vmatpush1.bf16.msra.mxu0 0
    %1709 = vmatprep.subr.bf16.mxu0 0
    %1710 = vmatpush1.bf16.msra.mxu0 0
    %1711 = vmatprep.subr.bf16.mxu0 0
    %1712 = vmatpush1.bf16.msra.mxu0 0
    %1713 = vmatprep.subr.bf16.mxu0 0
    %1714 = vmatpush1.bf16.msra.mxu0 0
    %1715 = vmatprep.subr.bf16.mxu0 0
    %1716 = vmatpush1.bf16.msra.mxu0 0
    %1717 = vmatprep.mubr.bf16.mxu0 0
    %1718 = vmatmul.mubr.bf16.gmra.mrb[0].mxu0 %v1509
    %v1719 = vpop.f32.mrb[0].mxu0
    %v1720 = vadd.f32 0.0, %v1719
    %v1721 = vpop.f32.mrb[0].mxu0
    %v1722 = vadd.f32 0.0, %v1721
    %v1723 = vpop.f32.mrb[0].mxu0
    %v1724 = vadd.f32 0.0, %v1723
    %v1725 = vpop.f32.mrb[0].mxu0
    %v1726 = vadd.f32 0.0, %v1725
    %1727 = vmatprep.mubr.bf16.mxu0 0
    %1728 = vmatmul.mubr.bf16.gmra.mrb[0].mxu0 %v1512
    %v1729 = vpop.f32.mrb[0].mxu0
    %v1730 = vadd.f32 0.0, %v1729
    %v1731 = vpop.f32.mrb[0].mxu0
    %v1732 = vadd.f32 0.0, %v1731
    %v1733 = vpop.f32.mrb[0].mxu0
    %v1734 = vadd.f32 0.0, %v1733
    %v1735 = vpop.f32.mrb[0].mxu0
    %v1736 = vadd.f32 0.0, %v1735
    %1737 = vmatprep.mubr.bf16.mxu0 0
    %1738 = vmatmul.mubr.bf16.gmra.mrb[0].mxu0 %v1515
    %v1739 = vpop.f32.mrb[0].mxu0
    %v1740 = vadd.f32 0.0, %v1739
    %v1741 = vpop.f32.mrb[0].mxu0
    %v1742 = vadd.f32 0.0, %v1741
    %v1743 = vpop.f32.mrb[0].mxu0
    %v1744 = vadd.f32 0.0, %v1743
    %v1745 = vpop.f32.mrb[0].mxu0
    %v1746 = vadd.f32 0.0, %v1745
    %1747 = vmatprep.mubr.bf16.mxu0 0
    %1748 = vmatmul.mubr.bf16.gmra.mrb[0].mxu0 %v1518
    %v1749 = vpop.f32.mrb[0].mxu0
    %v1750 = vadd.f32 0.0, %v1749
    %v1751 = vpop.f32.mrb[0].mxu0
    %v1752 = vadd.f32 0.0, %v1751
    %v1753 = vpop.f32.mrb[0].mxu0
    %v1754 = vadd.f32 0.0, %v1753
    %v1755 = vpop.f32.mrb[0].mxu0
    %v1756 = vadd.f32 0.0, %v1755
    %1757 = vdwg.mxu0
    %v1758 = vpack.c.bf16 %v1467, %v1466
    %v1759 = vpack.c.bf16 %v1469, %v1468
    %v1760 = vpack.c.bf16 %v1471, %v1470
    %v1761 = vpack.c.bf16 %v1473, %v1472
    %v1762 = vpack.c.bf16 %v1578, %v1574
    %v1763 = vpack.c.bf16 %v1580, %v1576
    %v1764 = vpack.c.bf16 %v1651, %v1647
    %v1765 = vpack.c.bf16 %v1653, %v1649
    %v1766 = vpack.c.bf16 %v1724, %v1720
    %v1767 = vpack.c.bf16 %v1726, %v1722
    %v1768 = vpack.c.bf16 %v1588, %v1584
    %v1769 = vpack.c.bf16 %v1590, %v1586
    %v1770 = vpack.c.bf16 %v1661, %v1657
    %v1771 = vpack.c.bf16 %v1663, %v1659
    %v1772 = vpack.c.bf16 %v1734, %v1730
    %v1773 = vpack.c.bf16 %v1736, %v1732
    %v1774 = vpack.c.bf16 %v1598, %v1594
    %v1775 = vpack.c.bf16 %v1600, %v1596
    %v1776 = vpack.c.bf16 %v1671, %v1667
    %v1777 = vpack.c.bf16 %v1673, %v1669
    %v1778 = vpack.c.bf16 %v1744, %v1740
    %v1779 = vpack.c.bf16 %v1746, %v1742
    %v1780 = vpack.c.bf16 %v1608, %v1604
    %v1781 = vpack.c.bf16 %v1610, %v1606
    %v1782 = vpack.c.bf16 %v1681, %v1677
    %v1783 = vpack.c.bf16 %v1683, %v1679
    %v1784 = vpack.c.bf16 %v1754, %v1750
    %v1785 = vpack.c.bf16 %v1756, %v1752
    %v1786 = vld [vmem:[%s5] sm:$0x3f]
    %v1788 = vlaneseq
    %v1789 = vshrl.u32 %v1788, 7
    %v1790 = vsub.s32 0, %v1789
    %v1791 = vrot.slane %v1786, %v1790
    %v1792 = vlaneseq
    %v1793 = vshrl.u32 %v1792, 7
    %v1794 = vsub.s32 1, %v1793
    %v1795 = vrot.slane %v1786, %v1794
    %v1796 = vlaneseq
    %v1797 = vshrl.u32 %v1796, 7
    %v1798 = vsub.s32 2, %v1797
    %v1799 = vrot.slane %v1786, %v1798
    %v1800 = vlaneseq
    %v1801 = vshrl.u32 %v1800, 7
    %v1802 = vsub.s32 3, %v1801
    %v1803 = vrot.slane %v1786, %v1802
    %v1804 = vlaneseq
    %v1805 = vshrl.u32 %v1804, 7
    %v1806 = vsub.s32 4, %v1805
    %v1807 = vrot.slane %v1786, %v1806
    %v1808 = vlaneseq
    %v1809 = vshrl.u32 %v1808, 7
    %v1810 = vsub.s32 5, %v1809
    %v1811 = vrot.slane %v1786, %v1810
    %v1819 = vsel %vm1385, %v1758, 0
    %v1822 = vsel %vm1385, %v1759, 0
    %v1825 = vsel %vm1385, %v1760, 0
    %v1828 = vsel %vm1385, %v1761, 0
    %1830 = vmatprep.subr.bf16.mxu0 %v1763
    %1831 = vmatpush1.bf16.msra.mxu0 %v1762
    %1832 = vmatprep.subr.bf16.mxu0 %v1769
    %1833 = vmatpush1.bf16.msra.mxu0 %v1768
    %1834 = vmatprep.subr.bf16.mxu0 %v1775
    %1835 = vmatpush1.bf16.msra.mxu0 %v1774
    %1836 = vmatprep.subr.bf16.mxu0 %v1781
    %1837 = vmatpush1.bf16.msra.mxu0 %v1780
    %1838 = vmatprep.subr.bf16.mxu0 0
    %1839 = vmatpush1.bf16.msra.mxu0 0
    %1840 = vmatprep.subr.bf16.mxu0 0
    %1841 = vmatpush1.bf16.msra.mxu0 0
    %1842 = vmatprep.subr.bf16.mxu0 0
    %1843 = vmatpush1.bf16.msra.mxu0 0
    %1844 = vmatprep.subr.bf16.mxu0 0
    %1845 = vmatpush1.bf16.msra.mxu0 0
    %1846 = vmatprep.subr.bf16.mxu0 0
    %1847 = vmatpush1.bf16.msra.mxu0 0
    %1848 = vmatprep.subr.bf16.mxu0 0
    %1849 = vmatpush1.bf16.msra.mxu0 0
    %1850 = vmatprep.subr.bf16.mxu0 0
    %1851 = vmatpush1.bf16.msra.mxu0 0
    %1852 = vmatprep.subr.bf16.mxu0 0
    %1853 = vmatpush1.bf16.msra.mxu0 0
    %1854 = vmatprep.subr.bf16.mxu0 0
    %1855 = vmatpush1.bf16.msra.mxu0 0
    %1856 = vmatprep.subr.bf16.mxu0 0
    %1857 = vmatpush1.bf16.msra.mxu0 0
    %1858 = vmatprep.subr.bf16.mxu0 0
    %1859 = vmatpush1.bf16.msra.mxu0 0
    %1860 = vmatprep.subr.bf16.mxu0 0
    %1861 = vmatpush1.bf16.msra.mxu0 0
    %1862 = vmatprep.mubr.bf16.mxu0 0
    %1863 = vmatmul.mubr.bf16.gmra.mrb[0].mxu0 %v1819
    %v1864 = vpop.f32.mrb[0].mxu0
    %v1865 = vadd.f32 %v1791, %v1864
    %v1866 = vpop.f32.mrb[0].mxu0
    %v1867 = vadd.f32 %v1795, %v1866
    %v1868 = vpop.f32.mrb[0].mxu0
    %v1869 = vadd.f32 %v1791, %v1868
    %v1870 = vpop.f32.mrb[0].mxu0
    %v1871 = vadd.f32 %v1795, %v1870
    %1872 = vmatprep.mubr.bf16.mxu0 0
    %1873 = vmatmul.mubr.bf16.gmra.mrb[0].mxu0 %v1822
    %v1874 = vpop.f32.mrb[0].mxu0
    %v1875 = vadd.f32 %v1791, %v1874
    %v1876 = vpop.f32.mrb[0].mxu0
    %v1877 = vadd.f32 %v1795, %v1876
    %v1878 = vpop.f32.mrb[0].mxu0
    %v1879 = vadd.f32 %v1791, %v1878
    %v1880 = vpop.f32.mrb[0].mxu0
    %v1881 = vadd.f32 %v1795, %v1880
    %1882 = vmatprep.mubr.bf16.mxu0 0
    %1883 = vmatmul.mubr.bf16.gmra.mrb[0].mxu0 %v1825
    %v1884 = vpop.f32.mrb[0].mxu0
    %v1885 = vadd.f32 %v1791, %v1884
    %v1886 = vpop.f32.mrb[0].mxu0
    %v1887 = vadd.f32 %v1795, %v1886
    %v1888 = vpop.f32.mrb[0].mxu0
    %v1889 = vadd.f32 %v1791, %v1888
    %v1890 = vpop.f32.mrb[0].mxu0
    %v1891 = vadd.f32 %v1795, %v1890
    %1892 = vmatprep.mubr.bf16.mxu0 0
    %1893 = vmatmul.mubr.bf16.gmra.mrb[0].mxu0 %v1828
    %v1894 = vpop.f32.mrb[0].mxu0
    %v1895 = vadd.f32 %v1791, %v1894
    %v1896 = vpop.f32.mrb[0].mxu0
    %v1897 = vadd.f32 %v1795, %v1896
    %v1898 = vpop.f32.mrb[0].mxu0
    %v1899 = vadd.f32 %v1791, %v1898
    %v1900 = vpop.f32.mrb[0].mxu0
    %v1901 = vadd.f32 %v1795, %v1900
    %1902 = vdwg.mxu0
    %1903 = vmatprep.subr.bf16.mxu0 %v1765
    %1904 = vmatpush1.bf16.msra.mxu0 %v1764
    %1905 = vmatprep.subr.bf16.mxu0 %v1771
    %1906 = vmatpush1.bf16.msra.mxu0 %v1770
    %1907 = vmatprep.subr.bf16.mxu0 %v1777
    %1908 = vmatpush1.bf16.msra.mxu0 %v1776
    %1909 = vmatprep.subr.bf16.mxu0 %v1783
    %1910 = vmatpush1.bf16.msra.mxu0 %v1782
    %1911 = vmatprep.subr.bf16.mxu0 0
    %1912 = vmatpush1.bf16.msra.mxu0 0
    %1913 = vmatprep.subr.bf16.mxu0 0
    %1914 = vmatpush1.bf16.msra.mxu0 0
    %1915 = vmatprep.subr.bf16.mxu0 0
    %1916 = vmatpush1.bf16.msra.mxu0 0
    %1917 = vmatprep.subr.bf16.mxu0 0
    %1918 = vmatpush1.bf16.msra.mxu0 0
    %1919 = vmatprep.subr.bf16.mxu0 0
    %1920 = vmatpush1.bf16.msra.mxu0 0
    %1921 = vmatprep.subr.bf16.mxu0 0
    %1922 = vmatpush1.bf16.msra.mxu0 0
    %1923 = vmatprep.subr.bf16.mxu0 0
    %1924 = vmatpush1.bf16.msra.mxu0 0
    %1925 = vmatprep.subr.bf16.mxu0 0
    %1926 = vmatpush1.bf16.msra.mxu0 0
    %1927 = vmatprep.subr.bf16.mxu0 0
    %1928 = vmatpush1.bf16.msra.mxu0 0
    %1929 = vmatprep.subr.bf16.mxu0 0
    %1930 = vmatpush1.bf16.msra.mxu0 0
    %1931 = vmatprep.subr.bf16.mxu0 0
    %1932 = vmatpush1.bf16.msra.mxu0 0
    %1933 = vmatprep.subr.bf16.mxu0 0
    %1934 = vmatpush1.bf16.msra.mxu0 0
    %1935 = vmatprep.mubr.bf16.mxu0 0
    %1936 = vmatmul.mubr.bf16.gmra.mrb[0].mxu0 %v1819
    %v1937 = vpop.f32.mrb[0].mxu0
    %v1938 = vadd.f32 %v1799, %v1937
    %v1939 = vpop.f32.mrb[0].mxu0
    %v1940 = vadd.f32 %v1803, %v1939
    %v1941 = vpop.f32.mrb[0].mxu0
    %v1942 = vadd.f32 %v1799, %v1941
    %v1943 = vpop.f32.mrb[0].mxu0
    %v1944 = vadd.f32 %v1803, %v1943
    %1945 = vmatprep.mubr.bf16.mxu0 0
    %1946 = vmatmul.mubr.bf16.gmra.mrb[0].mxu0 %v1822
    %v1947 = vpop.f32.mrb[0].mxu0
    %v1948 = vadd.f32 %v1799, %v1947
    %v1949 = vpop.f32.mrb[0].mxu0
    %v1950 = vadd.f32 %v1803, %v1949
    %v1951 = vpop.f32.mrb[0].mxu0
    %v1952 = vadd.f32 %v1799, %v1951
    %v1953 = vpop.f32.mrb[0].mxu0
    %v1954 = vadd.f32 %v1803, %v1953
    %1955 = vmatprep.mubr.bf16.mxu0 0
    %1956 = vmatmul.mubr.bf16.gmra.mrb[0].mxu0 %v1825
    %v1957 = vpop.f32.mrb[0].mxu0
    %v1958 = vadd.f32 %v1799, %v1957
    %v1959 = vpop.f32.mrb[0].mxu0
    %v1960 = vadd.f32 %v1803, %v1959
    %v1961 = vpop.f32.mrb[0].mxu0
    %v1962 = vadd.f32 %v1799, %v1961
    %v1963 = vpop.f32.mrb[0].mxu0
    %v1964 = vadd.f32 %v1803, %v1963
    %1965 = vmatprep.mubr.bf16.mxu0 0
    %1966 = vmatmul.mubr.bf16.gmra.mrb[0].mxu0 %v1828
    %v1967 = vpop.f32.mrb[0].mxu0
    %v1968 = vadd.f32 %v1799, %v1967
    %v1969 = vpop.f32.mrb[0].mxu0
    %v1970 = vadd.f32 %v1803, %v1969
    %v1971 = vpop.f32.mrb[0].mxu0
    %v1972 = vadd.f32 %v1799, %v1971
    %v1973 = vpop.f32.mrb[0].mxu0
    %v1974 = vadd.f32 %v1803, %v1973
    %1975 = vdwg.mxu0
    %1976 = vmatprep.subr.bf16.mxu0 %v1767
    %1977 = vmatpush1.bf16.msra.mxu0 %v1766
    %1978 = vmatprep.subr.bf16.mxu0 %v1773
    %1979 = vmatpush1.bf16.msra.mxu0 %v1772
    %1980 = vmatprep.subr.bf16.mxu0 %v1779
    %1981 = vmatpush1.bf16.msra.mxu0 %v1778
    %1982 = vmatprep.subr.bf16.mxu0 %v1785
    %1983 = vmatpush1.bf16.msra.mxu0 %v1784
    %1984 = vmatprep.subr.bf16.mxu0 0
    %1985 = vmatpush1.bf16.msra.mxu0 0
    %1986 = vmatprep.subr.bf16.mxu0 0
    %1987 = vmatpush1.bf16.msra.mxu0 0
    %1988 = vmatprep.subr.bf16.mxu0 0
    %1989 = vmatpush1.bf16.msra.mxu0 0
    %1990 = vmatprep.subr.bf16.mxu0 0
    %1991 = vmatpush1.bf16.msra.mxu0 0
    %1992 = vmatprep.subr.bf16.mxu0 0
    %1993 = vmatpush1.bf16.msra.mxu0 0
    %1994 = vmatprep.subr.bf16.mxu0 0
    %1995 = vmatpush1.bf16.msra.mxu0 0
    %1996 = vmatprep.subr.bf16.mxu0 0
    %1997 = vmatpush1.bf16.msra.mxu0 0
    %1998 = vmatprep.subr.bf16.mxu0 0
    %1999 = vmatpush1.bf16.msra.mxu0 0
    %2000 = vmatprep.subr.bf16.mxu0 0
    %2001 = vmatpush1.bf16.msra.mxu0 0
    %2002 = vmatprep.subr.bf16.mxu0 0
    %2003 = vmatpush1.bf16.msra.mxu0 0
    %2004 = vmatprep.subr.bf16.mxu0 0
    %2005 = vmatpush1.bf16.msra.mxu0 0
    %2006 = vmatprep.subr.bf16.mxu0 0
    %2007 = vmatpush1.bf16.msra.mxu0 0
    %2008 = vmatprep.mubr.bf16.mxu0 0
    %2009 = vmatmul.mubr.bf16.gmra.mrb[0].mxu0 %v1819
    %v2010 = vpop.f32.mrb[0].mxu0
    %v2011 = vadd.f32 %v1807, %v2010
    %v2012 = vpop.f32.mrb[0].mxu0
    %v2013 = vadd.f32 %v1811, %v2012
    %v2014 = vpop.f32.mrb[0].mxu0
    %v2015 = vadd.f32 %v1807, %v2014
    %v2016 = vpop.f32.mrb[0].mxu0
    %v2017 = vadd.f32 %v1811, %v2016
    %2018 = vmatprep.mubr.bf16.mxu0 0
    %2019 = vmatmul.mubr.bf16.gmra.mrb[0].mxu0 %v1822
    %v2020 = vpop.f32.mrb[0].mxu0
    %v2021 = vadd.f32 %v1807, %v2020
    %v2022 = vpop.f32.mrb[0].mxu0
    %v2023 = vadd.f32 %v1811, %v2022
    %v2024 = vpop.f32.mrb[0].mxu0
    %v2025 = vadd.f32 %v1807, %v2024
    %v2026 = vpop.f32.mrb[0].mxu0
    %v2027 = vadd.f32 %v1811, %v2026
    %2028 = vmatprep.mubr.bf16.mxu0 0
    %2029 = vmatmul.mubr.bf16.gmra.mrb[0].mxu0 %v1825
    %v2030 = vpop.f32.mrb[0].mxu0
    %v2031 = vadd.f32 %v1807, %v2030
    %v2032 = vpop.f32.mrb[0].mxu0
    %v2033 = vadd.f32 %v1811, %v2032
    %v2034 = vpop.f32.mrb[0].mxu0
    %v2035 = vadd.f32 %v1807, %v2034
    %v2036 = vpop.f32.mrb[0].mxu0
    %v2037 = vadd.f32 %v1811, %v2036
    %2038 = vmatprep.mubr.bf16.mxu0 0
    %2039 = vmatmul.mubr.bf16.gmra.mrb[0].mxu0 %v1828
    %v2040 = vpop.f32.mrb[0].mxu0
    %v2041 = vadd.f32 %v1807, %v2040
    %v2042 = vpop.f32.mrb[0].mxu0
    %v2043 = vadd.f32 %v1811, %v2042
    %v2044 = vpop.f32.mrb[0].mxu0
    %v2045 = vadd.f32 %v1807, %v2044
    %v2046 = vpop.f32.mrb[0].mxu0
    %v2047 = vadd.f32 %v1811, %v2046
    %2048 = vdwg.mxu0
    %2049 = vst [vmem:[#allocation2] sm:$0xff] %v1865
    %2050 = vst [vmem:[#allocation2 + $0x8] sm:$0xff] %v1867
    %2051 = vst [vmem:[#allocation2 + $0x10] sm:$0xff] %v1938
    %2052 = vst [vmem:[#allocation2 + $0x18] sm:$0xff] %v1940
    %2053 = vst [vmem:[#allocation2 + $0x20] sm:$0xff] %v2011
    %2054 = vst [vmem:[#allocation2 + $0x28] sm:$0xff] %v2013
    %2055 = vst [vmem:[#allocation2 + $0x30] sm:$0xff] %v1869
    %2056 = vst [vmem:[#allocation2 + $0x38] sm:$0xff] %v1871
    %2057 = vst [vmem:[#allocation2 + $0x40] sm:$0xff] %v1942
    %2058 = vst [vmem:[#allocation2 + $0x48] sm:$0xff] %v1944
    %2059 = vst [vmem:[#allocation2 + $0x50] sm:$0xff] %v2015
    %2060 = vst [vmem:[#allocation2 + $0x58] sm:$0xff] %v2017
    %2061 = vst [vmem:[#allocation2 + $0x60] sm:$0xff] %v1875
    %2062 = vst [vmem:[#allocation2 + $0x68] sm:$0xff] %v1877
    %2063 = vst [vmem:[#allocation2 + $0x70] sm:$0xff] %v1948
    %2064 = vst [vmem:[#allocation2 + $0x78] sm:$0xff] %v1950
    %2065 = vst [vmem:[#allocation2 + $0x80] sm:$0xff] %v2021
    %2066 = vst [vmem:[#allocation2 + $0x88] sm:$0xff] %v2023
    %2067 = vst [vmem:[#allocation2 + $0x90] sm:$0xff] %v1879
    %2068 = vst [vmem:[#allocation2 + $0x98] sm:$0xff] %v1881
    %2069 = vst [vmem:[#allocation2 + $0xa0] sm:$0xff] %v1952
    %2070 = vst [vmem:[#allocation2 + $0xa8] sm:$0xff] %v1954
    %2071 = vst [vmem:[#allocation2 + $0xb0] sm:$0xff] %v2025
    %2072 = vst [vmem:[#allocation2 + $0xb8] sm:$0xff] %v2027
    %2073 = vst [vmem:[#allocation2 + $0xc0] sm:$0xff] %v1885
    %2074 = vst [vmem:[#allocation2 + $0xc8] sm:$0xff] %v1887
    %2075 = vst [vmem:[#allocation2 + $0xd0] sm:$0xff] %v1958
    %2076 = vst [vmem:[#allocation2 + $0xd8] sm:$0xff] %v1960
    %2077 = vst [vmem:[#allocation2 + $0xe0] sm:$0xff] %v2031
    %2078 = vst [vmem:[#allocation2 + $0xe8] sm:$0xff] %v2033
    %2079 = vst [vmem:[#allocation2 + $0xf0] sm:$0xff] %v1889
    %2080 = vst [vmem:[#allocation2 + $0xf8] sm:$0xff] %v1891
    %2081 = vst [vmem:[#allocation2 + $0x100] sm:$0xff] %v1962
    %2082 = vst [vmem:[#allocation2 + $0x108] sm:$0xff] %v1964
    %2083 = vst [vmem:[#allocation2 + $0x110] sm:$0xff] %v2035
    %2084 = vst [vmem:[#allocation2 + $0x118] sm:$0xff] %v2037
    %2085 = vst [vmem:[#allocation2 + $0x120] sm:$0xff] %v1895
    %2086 = vst [vmem:[#allocation2 + $0x128] sm:$0xff] %v1897
    %2087 = vst [vmem:[#allocation2 + $0x130] sm:$0xff] %v1968
    %2088 = vst [vmem:[#allocation2 + $0x138] sm:$0xff] %v1970
    %2089 = vst [vmem:[#allocation2 + $0x140] sm:$0xff] %v2041
    %2090 = vst [vmem:[#allocation2 + $0x148] sm:$0xff] %v2043
    %2091 = vst [vmem:[#allocation2 + $0x150] sm:$0xff] %v1899
    %2092 = vst [vmem:[#allocation2 + $0x158] sm:$0xff] %v1901
    %2093 = vst [vmem:[#allocation2 + $0x160] sm:$0xff] %v1972
    %2094 = vst [vmem:[#allocation2 + $0x168] sm:$0xff] %v1974
    %2095 = vst [vmem:[#allocation2 + $0x170] sm:$0xff] %v2045
    %2096 = vst [vmem:[#allocation2 + $0x178] sm:$0xff] %v2047
    // Predicated region
    $region26: #{attention_forward.1} parent=1 // pred_check
      _
    $region27: #{attention_forward.1} parent=1 // pred_check_branch
      %2098 = sbr.rel (0) target = $region29
    $region28: #{attention_forward.1} parent=1 // pred_region
      %s2100 = ssub.s32 6144, 6144
      %2101 = vsyncadd [#allocation3], %s2100
      %s2102 = sshll.u32 [#allocation2], 4
      %s2103 = int_to_ptr.vmem [resolvable:$true] %s2102
      %2108 = dma.vmem_to_hbm [thread:$0]  %s2103, 6144, %s6, [#allocation3], 768, 768, 48
    $region29: #{attention_forward.1} parent=1 // pred_fallthru
      _
    // Predicated region
    $region30: #{attention_forward.1} parent=1 // pred_check
      _
    $region31: #{attention_forward.1} parent=1 // pred_check_branch
      %2110 = sbr.rel (0) target = $region33
    $region32: #{attention_forward.1} parent=1 // pred_region
      %2111 = dma.done [#allocation3], 6144
    $region33: #{attention_forward.1} parent=1 // pred_fallthru
      _
    %2112 = vsyncpa [#allocation3], 1

</llo_original>
